<compile_context>
chip_gen: v6e
topology: v6e:2x2x1
jax: 0.10.0
libtpu: 0.0.40
codegen_flags: <defaults>
</compile_context>

<pallas_src>
import functools

import jax
import jax.numpy as jnp
from jax.experimental import pallas as pl
from jax.experimental.pallas import tpu as pltpu

EPS = 1e-5
NEG_SLOPE = 0.1


def _pick_vmem_limit():
    """~3/4 of physical VMEM, capped at 96 MiB (safe on v5e/v6e/v7x)."""
    default = 48 * 1024 * 1024
    try:
        phys = int(pltpu.get_tpu_info().vmem_capacity_bytes)
        if phys <= 0:
            return default
        return int(max(32 * 1024 * 1024, min(96 * 1024 * 1024, (phys * 3) // 4)))
    except Exception:
        return default


VMEM_LIMIT = _pick_vmem_limit()


def _choose_tile_m(m):
    """Largest multiple-of-8 divisor of m up to 2048 with >= 2 tiles when
    possible (so the 'parallel' axis can shard across TensorCores); falls back
    to a single full-extent tile (always a legal BlockSpec)."""
    upper = min(m - 1 if m > 8 else m, 2048)
    upper -= upper % 8
    for t in range(upper, 7, -8):
        if t > 0 and m % t == 0:
            return t
    return m


def _lrelu(x):
    return jnp.where(x >= 0, x, NEG_SLOPE * x)


# ---------------------------------------------------------------------------
# Pass 1: (optional fused BN+LeakyReLU of the previous layer) + 3x3 conv
#         + per-image batch-stat partials.  One image per grid step.
# ---------------------------------------------------------------------------
def _conv_stats_kernel(x_ref, scale_ref, shift_ref, w_ref, conv_ref, stats_ref,
                       pad_ref, *, H, W, packed, prenorm):
    """x_ref:     (1, H, W, C)       bf16  raw input / previous raw conv output
       scale_ref: (1, C) f32, shift_ref: (1, C) f32   (prenorm affine; dummy if
                  prenorm=False)
       w_ref:     (9*C, Cout) bf16 if packed else (9, C, Cout) bf16
       conv_ref:  (1, H*W, Cout)     bf16  raw (pre-BN) conv output
       stats_ref: (1, 2, Cout)       f32   per-image [sum; sum_sq]
       pad_ref:   (H+2, W+2, C)      bf16  VMEM scratch (halo pad)
    """
    C = x_ref.shape[-1]
    x = x_ref[0]                                     # (H, W, C)

    if prenorm:
        # Fused BN(prev layer) + LeakyReLU on the fly (f32 math).
        v = x.reshape(H * W, C).astype(jnp.float32)
        v = v * scale_ref[...] + shift_ref[...]
        v = _lrelu(v)
        y = v.astype(jnp.bfloat16).reshape(H, W, C)
    else:
        y = x.astype(jnp.bfloat16)

    # Spatial zero-pad (pad=1) inside VMEM — no host-side jnp.pad round trip.
    pad_ref[...] = jnp.zeros_like(pad_ref)
    pad_ref[1:H + 1, 1:W + 1, :] = y

    if packed:
        # Small C: pack the nine taps into the K dimension -> one MXU dot.
        taps = [pad_ref[kh:kh + H, kw:kw + W, :]
                for kh in range(3) for kw in range(3)]
        patches = jnp.concatenate(taps, axis=-1).reshape(H * W, 9 * C)
        acc = jnp.dot(patches, w_ref[...], preferred_element_type=jnp.float32)
    else:
        # Large C: nine accumulated K=C dots (no 9x patch buffer).
        cout = w_ref.shape[-1]
        acc = jnp.zeros((H * W, cout), jnp.float32)
        t = 0
        for kh in range(3):
            for kw in range(3):
                tap = pad_ref[kh:kh + H, kw:kw + W, :].reshape(H * W, C)
                acc = acc + jnp.dot(tap, w_ref[t],
                                    preferred_element_type=jnp.float32)
                t += 1

    conv_ref[0] = acc.astype(conv_ref.dtype)

    # Per-image partial stats (reduced over N on the host -> grid is parallel).
    s0 = jnp.sum(acc, axis=0, keepdims=True)
    s1 = jnp.sum(acc * acc, axis=0, keepdims=True)
    stats_ref[0] = jnp.concatenate([s0, s1], axis=0)


def conv3x3_stats(x_nhwc, w_oihw, scale=None, shift=None):
    """3x3/s1/p1 conv (+ optional fused prenorm) + per-image batch stats.

    x_nhwc: (N, H, W, Cin) bf16;  w_oihw: (Cout, Cin, 3, 3) f32.
    Returns conv_raw (N, H*W, Cout) bf16 and stats (N, 2, Cout) f32.
    """
    N, H, W, cin = x_nhwc.shape
    cout = w_oihw.shape[0]
    prenorm = scale is not None
    packed = cin < 128

    wt = jnp.transpose(w_oihw, (2, 3, 1, 0)).astype(jnp.bfloat16)  # (3,3,Cin,Cout)
    if packed:
        wt = wt.reshape(9 * cin, cout)
        w_spec = pl.BlockSpec((9 * cin, cout), lambda n: (0, 0))
    else:
        wt = wt.reshape(9, cin, cout)
        w_spec = pl.BlockSpec((9, cin, cout), lambda n: (0, 0, 0))

    if scale is None:
        scale = jnp.ones((1, cin), jnp.float32)
        shift = jnp.zeros((1, cin), jnp.float32)

    cost = pl.CostEstimate(
        flops=2 * N * H * W * 9 * cin * cout,
        transcendentals=0,
        bytes_accessed=(N * H * W * cin * 2 + wt.size * 2
                        + N * H * W * cout * 2 + N * 2 * cout * 4),
    )

    conv_raw, stats = pl.pallas_call(
        functools.partial(_conv_stats_kernel, H=H, W=W,
                          packed=packed, prenorm=prenorm),
        grid=(N,),
        in_specs=[
            pl.BlockSpec((1, H, W, cin), lambda n: (n, 0, 0, 0)),
            pl.BlockSpec((1, cin), lambda n: (0, 0)),
            pl.BlockSpec((1, cin), lambda n: (0, 0)),
            w_spec,
        ],
        out_specs=[
            pl.BlockSpec((1, H * W, cout), lambda n: (n, 0, 0)),
            pl.BlockSpec((1, 2, cout), lambda n: (n, 0, 0)),
        ],
        out_shape=[
            jax.ShapeDtypeStruct((N, H * W, cout), jnp.bfloat16),
            jax.ShapeDtypeStruct((N, 2, cout), jnp.float32),
        ],
        scratch_shapes=[pltpu.VMEM((H + 2, W + 2, cin), jnp.bfloat16)],
        compiler_params=pltpu.CompilerParams(
            dimension_semantics=("parallel",),   # no carried state -> shardable
            vmem_limit_bytes=VMEM_LIMIT,
        ),
        cost_estimate=cost,
    )(x_nhwc, scale, shift, wt)
    return conv_raw, stats


def bn_scale_shift(stats, gamma, beta, count):
    """Reduce per-image partials and fold BatchNorm into per-channel scale/shift.
    stats: (N, 2, C) f32 -> scale, shift each (1, C) f32."""
    s = jnp.sum(stats, axis=0)                         # (2, C)
    mean = s[0] / count
    var = jnp.maximum(s[1] / count - mean * mean, 0.0)  # clamp cancellation
    scale = gamma.astype(jnp.float32) * jax.lax.rsqrt(var + EPS)
    shift = beta.astype(jnp.float32) - mean * scale
    return scale.reshape(1, -1), shift.reshape(1, -1)


# ---------------------------------------------------------------------------
# Pass 2 (final): BN(a) [+ inner LeakyReLU] + BN-or-raw residual + LeakyReLU
# ---------------------------------------------------------------------------
def _bn_add_act_kernel(a_ref, a_scale_ref, a_shift_ref, b_ref, b_scale_ref,
                       b_shift_ref, out_ref, *, act_a):
    a = a_ref[...].astype(jnp.float32) * a_scale_ref[...] + a_shift_ref[...]
    if act_a:                       # inner activation BEFORE the residual add
        a = _lrelu(a)
    b = b_ref[...].astype(jnp.float32) * b_scale_ref[...] + b_shift_ref[...]
    y = a + b
    out_ref[...] = _lrelu(y).astype(out_ref.dtype)


def bn_add_act(a, a_scale, a_shift, b, b_scale, b_shift, *, act_a,
               out_dtype=jnp.float32):
    """Fused elementwise tail.  a, b: (M, C); scale/shift: (1, C)."""
    M, C = a.shape
    tile_m = _choose_tile_m(M)
    row_spec = pl.BlockSpec((tile_m, C), lambda i: (i, 0))
    vec_spec = pl.BlockSpec((1, C), lambda i: (0, 0))
    return pl.pallas_call(
        functools.partial(_bn_add_act_kernel, act_a=act_a),
        grid=(M // tile_m,),
        in_specs=[row_spec, vec_spec, vec_spec, row_spec, vec_spec, vec_spec],
        out_specs=pl.BlockSpec((tile_m, C), lambda i: (i, 0)),
        out_shape=jax.ShapeDtypeStruct((M, C), out_dtype),
        compiler_params=pltpu.CompilerParams(
            dimension_semantics=("parallel",),
            vmem_limit_bytes=VMEM_LIMIT,
        ),
    )(a, a_scale, a_shift, b, b_scale, b_shift)


# ---------------------------------------------------------------------------
# Full forward pass
# ---------------------------------------------------------------------------
def residual_conv_forward(x_nchw, params):
    """Pallas implementation of Residual_conv.forward (batch_norm=True, train)."""
    x = jnp.transpose(x_nchw, (0, 2, 3, 1))               # NCHW -> NHWC
    N, H, W, cin = x.shape
    cout = params["w1"].shape[0]
    M = N * H * W
    x_bf = x.astype(jnp.bfloat16)

    # conv1 (raw) + stats; BN1+LeakyReLU will be fused into conv2's input.
    c1, st1 = conv3x3_stats(x_bf, params["w1"])
    sc1, sh1 = bn_scale_shift(st1, params["g1"], params["b1"], M)

    # conv2 with prenorm = LeakyReLU(BN1(.)) applied on the fly.
    c2, st2 = conv3x3_stats(c1.reshape(N, H, W, cout), params["w2"], sc1, sh1)
    sc2, sh2 = bn_scale_shift(st2, params["g2"], params["b2"], M)

    ones = jnp.ones((1, cout), jnp.float32)
    zeros = jnp.zeros((1, cout), jnp.float32)

    if "w3" in params:
        # Projection residual: X' = BN_(conv3(X))
        c3, st3 = conv3x3_stats(x_bf, params["w3"])
        sc3, sh3 = bn_scale_shift(st3, params["g_"], params["b_"], M)
        # Main branch: conv4 with prenorm = LeakyReLU(BN2(.)).
        c4, st4 = conv3x3_stats(c2.reshape(N, H, W, cout), params["w4"], sc2, sh2)
        sc4, sh4 = bn_scale_shift(st4, params["g3"], params["b3"], M)
        # out = LeakyReLU( BN3(conv4(Y)) + BN_(conv3(X)) )  (no inner act)
        out = bn_add_act(c4.reshape(M, cout), sc4, sh4,
                         c3.reshape(M, cout), sc3, sh3, act_a=False)
    else:
        # Identity residual: out = LeakyReLU( LeakyReLU(BN2(conv2(Y))) + X )
        # (inner LeakyReLU applied before the add — this fixes the prior bug).
        out = bn_add_act(c2.reshape(M, cout), sc2, sh2,
                         x_bf.reshape(M, cin), ones, zeros, act_a=True)

    out = out.reshape(N, H, W, cout)
    return jnp.transpose(out, (0, 3, 1, 2))               # NHWC -> NCHW


# ---------------------------------------------------------------------------
# Pure-JAX f32 reference (correctness check)
# ---------------------------------------------------------------------------
def _ref_forward(x_nchw, params):
    def conv(x, w):
        return jax.lax.conv_general_dilated(
            x, w, (1, 1), ((1, 1), (1, 1)),
            dimension_numbers=("NCHW", "OIHW", "NCHW"))

    def bn(x, g, b):
        mean = jnp.mean(x, axis=(0, 2, 3), keepdims=True)
        var = jnp.mean((x - mean) ** 2, axis=(0, 2, 3), keepdims=True)
        xn = (x - mean) * jax.lax.rsqrt(var + EPS)
        return xn * g.reshape(1, -1, 1, 1) + b.reshape(1, -1, 1, 1)

    def lrelu(x):
        return jnp.where(x >= 0, x, NEG_SLOPE * x)

    x = x_nchw.astype(jnp.float32)
    y = lrelu(bn(conv(x, params["w1"]), params["g1"], params["b1"]))
    y = lrelu(bn(conv(y, params["w2"]), params["g2"], params["b2"]))
    if "w3" in params:
        xb = bn(conv(x, params["w3"]), params["g_"], params["b_"])
        y = bn(conv(y, params["w4"]), params["g3"], params["b3"])
        return lrelu(y + xb)
    return lrelu(y + x)


# ---------------------------------------------------------------------------
# Main
# ---------------------------------------------------------------------------
if __name__ == "__main__":
    def make_params(key, cin, cout, projection):
        ks = jax.random.split(key, 4)
        p = {
            "w1": 0.1 * jax.random.normal(ks[0], (cout, cin, 3, 3), jnp.float32),
            "w2": 0.1 * jax.random.normal(ks[1], (cout, cout, 3, 3), jnp.float32),
            "g1": jnp.ones((cout,), jnp.float32), "b1": jnp.zeros((cout,), jnp.float32),
            "g2": jnp.ones((cout,), jnp.float32), "b2": jnp.zeros((cout,), jnp.float32),
        }
        if projection:
            p.update({
                "w3": 0.1 * jax.random.normal(ks[2], (cout, cin, 3, 3), jnp.float32),
                "w4": 0.1 * jax.random.normal(ks[3], (cout, cout, 3, 3), jnp.float32),
                "g3": jnp.ones((cout,), jnp.float32), "b3": jnp.zeros((cout,), jnp.float32),
                "g_": jnp.ones((cout,), jnp.float32), "b_": jnp.zeros((cout,), jnp.float32),
            })
        return p

    N, H, W = 2, 16, 16
    k1, k2, k3, k4 = jax.random.split(jax.random.PRNGKey(0), 4)

    # Case 1: in_channels != out_channels -> conv3/conv4 projection path.
    params_a = make_params(k1, 4, 8, projection=True)
    x_a = jax.random.normal(k2, (N, 4, H, W), jnp.float32)
    out_a = jax.block_until_ready(residual_conv_forward(x_a, params_a))
    ref_a = jax.block_until_ready(_ref_forward(x_a, params_a))
    assert out_a.shape == (N, 8, H, W)
    # bf16 MXU inputs / bf16 conv_raw storage vs f32 reference -> loose tolerance
    assert jnp.allclose(out_a, ref_a, rtol=2e-2, atol=5e-2), \
        float(jnp.max(jnp.abs(out_a - ref_a)))

    # Case 2: in_channels == out_channels -> fused identity-residual path.
    params_b = make_params(k3, 8, 8, projection=False)
    x_b = jax.random.normal(k4, (N, 8, H, W), jnp.float32)
    out_b = jax.block_until_ready(residual_conv_forward(x_b, params_b))
    ref_b = jax.block_until_ready(_ref_forward(x_b, params_b))
    assert out_b.shape == (N, 8, H, W)
    assert jnp.allclose(out_b, ref_b, rtol=2e-2, atol=5e-2), \
        float(jnp.max(jnp.abs(out_b - ref_b)))

    print("KERNEL_OK")
</pallas_src>

<mosaic_0001>
module attributes {stable_mosaic.version = 11 : i64} {
  func.func @_conv_stats_kernel(%arg0: i32, %arg1: memref<1x16x16x4xbf16, #tpu.memory_space<vmem>>, %arg2: memref<1x4xf32, #tpu.memory_space<vmem>>, %arg3: memref<1x4xf32, #tpu.memory_space<vmem>>, %arg4: memref<36x8xbf16, #tpu.memory_space<vmem>>, %arg5: memref<1x256x8xbf16, #tpu.memory_space<vmem>>, %arg6: memref<1x2x8xf32, #tpu.memory_space<vmem>>, %arg7: memref<18x18x4xbf16, #tpu.memory_space<vmem>>) attributes {dimension_semantics = [#tpu.dimension_semantics<parallel>], iteration_bounds = array<i64: 2>, scalar_prefetch = 0 : i64, scratch_operands = 1 : i64, tpu.core_type = #tpu.core_type<tc>, window_params = [{transform_indices = @transform_0, window_bounds = array<i64: 1, 16, 16, 4>}, {pipeline_mode = #tpu.pipeline_mode<synchronous>, transform_indices = @transform_1, window_bounds = array<i64: 1, 4>}, {pipeline_mode = #tpu.pipeline_mode<synchronous>, transform_indices = @transform_2, window_bounds = array<i64: 1, 4>}, {pipeline_mode = #tpu.pipeline_mode<synchronous>, transform_indices = @transform_3, window_bounds = array<i64: 36, 8>}, {transform_indices = @transform_4, window_bounds = array<i64: 1, 256, 8>}, {transform_indices = @transform_5, window_bounds = array<i64: 1, 2, 8>}]} {
    %c0 = arith.constant 0 : index
    %c0_0 = arith.constant 0 : index
    %c0_1 = arith.constant 0 : index
    %c0_2 = arith.constant 0 : index
    %0 = vector.load %arg1[%c0, %c0_0, %c0_1, %c0_2] : memref<1x16x16x4xbf16, #tpu.memory_space<vmem>>, vector<1x16x16x4xbf16>
    %1 = vector.shape_cast %0 : vector<1x16x16x4xbf16> to vector<16x16x4xbf16>
    %cst = arith.constant 0.000000e+00 : bf16
    %2 = vector.broadcast %cst : bf16 to vector<18x18x4xbf16>
    %c0_3 = arith.constant 0 : index
    %c0_4 = arith.constant 0 : index
    %c0_5 = arith.constant 0 : index
    %3 = vector.load %arg7[%c0_3, %c0_4, %c0_5] : memref<18x18x4xbf16, #tpu.memory_space<vmem>>, vector<18x18x4xbf16>
    tpu.vector_store %arg7[%c0_3, %c0_4, %c0_5], %2 {strides = array<i32>} : memref<18x18x4xbf16, #tpu.memory_space<vmem>>, vector<18x18x4xbf16>,
    %c1 = arith.constant 1 : index
    %c1_6 = arith.constant 1 : index
    %c0_7 = arith.constant 0 : index
    %4 = vector.load %arg7[%c1, %c1_6, %c0_7] : memref<18x18x4xbf16, #tpu.memory_space<vmem>>, vector<16x16x4xbf16>
    tpu.vector_store %arg7[%c1, %c1_6, %c0_7], %1 {strides = array<i32>} : memref<18x18x4xbf16, #tpu.memory_space<vmem>>, vector<16x16x4xbf16>,
    %c0_8 = arith.constant 0 : index
    %c0_9 = arith.constant 0 : index
    %c0_10 = arith.constant 0 : index
    %5 = vector.load %arg7[%c0_8, %c0_9, %c0_10] : memref<18x18x4xbf16, #tpu.memory_space<vmem>>, vector<16x16x4xbf16>
    %c0_11 = arith.constant 0 : index
    %c1_12 = arith.constant 1 : index
    %c0_13 = arith.constant 0 : index
    %6 = vector.load %arg7[%c0_11, %c1_12, %c0_13] : memref<18x18x4xbf16, #tpu.memory_space<vmem>>, vector<16x16x4xbf16>
    %c0_14 = arith.constant 0 : index
    %c2 = arith.constant 2 : index
    %c0_15 = arith.constant 0 : index
    %7 = vector.load %arg7[%c0_14, %c2, %c0_15] : memref<18x18x4xbf16, #tpu.memory_space<vmem>>, vector<16x16x4xbf16>
    %c1_16 = arith.constant 1 : index
    %c0_17 = arith.constant 0 : index
    %c0_18 = arith.constant 0 : index
    %8 = vector.load %arg7[%c1_16, %c0_17, %c0_18] : memref<18x18x4xbf16, #tpu.memory_space<vmem>>, vector<16x16x4xbf16>
    %c1_19 = arith.constant 1 : index
    %c1_20 = arith.constant 1 : index
    %c0_21 = arith.constant 0 : index
    %9 = vector.load %arg7[%c1_19, %c1_20, %c0_21] : memref<18x18x4xbf16, #tpu.memory_space<vmem>>, vector<16x16x4xbf16>
    %c1_22 = arith.constant 1 : index
    %c2_23 = arith.constant 2 : index
    %c0_24 = arith.constant 0 : index
    %10 = vector.load %arg7[%c1_22, %c2_23, %c0_24] : memref<18x18x4xbf16, #tpu.memory_space<vmem>>, vector<16x16x4xbf16>
    %c2_25 = arith.constant 2 : index
    %c0_26 = arith.constant 0 : index
    %c0_27 = arith.constant 0 : index
    %11 = vector.load %arg7[%c2_25, %c0_26, %c0_27] : memref<18x18x4xbf16, #tpu.memory_space<vmem>>, vector<16x16x4xbf16>
    %c2_28 = arith.constant 2 : index
    %c1_29 = arith.constant 1 : index
    %c0_30 = arith.constant 0 : index
    %12 = vector.load %arg7[%c2_28, %c1_29, %c0_30] : memref<18x18x4xbf16, #tpu.memory_space<vmem>>, vector<16x16x4xbf16>
    %c2_31 = arith.constant 2 : index
    %c2_32 = arith.constant 2 : index
    %c0_33 = arith.constant 0 : index
    %13 = vector.load %arg7[%c2_31, %c2_32, %c0_33] : memref<18x18x4xbf16, #tpu.memory_space<vmem>>, vector<16x16x4xbf16>
    %14 = tpu.concatenate %5, %6, %7, %8, %9, %10, %11, %12, %13 in 2 : vector<16x16x4xbf16>, vector<16x16x4xbf16>, vector<16x16x4xbf16>, vector<16x16x4xbf16>, vector<16x16x4xbf16>, vector<16x16x4xbf16>, vector<16x16x4xbf16>, vector<16x16x4xbf16>, vector<16x16x4xbf16> -> vector<16x16x36xbf16>
    %15 = vector.shape_cast %14 : vector<16x16x36xbf16> to vector<256x36xbf16>
    %c0_34 = arith.constant 0 : index
    %c0_35 = arith.constant 0 : index
    %16 = vector.load %arg4[%c0_34, %c0_35] : memref<36x8xbf16, #tpu.memory_space<vmem>>, vector<36x8xbf16>
    %cst_36 = arith.constant dense<0.000000e+00> : vector<256x8xf32>
    %17 = tpu.matmul %15, %16, %cst_36 {dimension_numbers = #tpu.dot_dimension_numbers<[1], [0], [0], [1], [0, 0, 1, 1], [], []>} : vector<256x36xbf16>, vector<36x8xbf16>, vector<256x8xf32> -> vector<256x8xf32>
    %18 = arith.truncf %17 : vector<256x8xf32> to vector<256x8xbf16>
    %c0_37 = arith.constant 0 : index
    %c0_38 = arith.constant 0 : index
    %c0_39 = arith.constant 0 : index
    %19 = vector.load %arg5[%c0_37, %c0_38, %c0_39] : memref<1x256x8xbf16, #tpu.memory_space<vmem>>, vector<1x256x8xbf16>
    %20 = vector.shape_cast %19 : vector<1x256x8xbf16> to vector<256x8xbf16>
    %21 = vector.shape_cast %18 : vector<256x8xbf16> to vector<1x256x8xbf16>
    tpu.vector_store %arg5[%c0_37, %c0_38, %c0_39], %21 {strides = array<i32>} : memref<1x256x8xbf16, #tpu.memory_space<vmem>>, vector<1x256x8xbf16>,
    %cst_40 = arith.constant dense<0.000000e+00> : vector<8xf32>
    %22 = vector.multi_reduction <add>, %17, %cst_40 [0] : vector<256x8xf32> to vector<8xf32>
    %23 = vector.shape_cast %22 : vector<8xf32> to vector<1x8xf32>
    %24 = arith.mulf %17, %17 : vector<256x8xf32>
    %cst_41 = arith.constant dense<0.000000e+00> : vector<8xf32>
    %25 = vector.multi_reduction <add>, %24, %cst_41 [0] : vector<256x8xf32> to vector<8xf32>
    %26 = vector.shape_cast %25 : vector<8xf32> to vector<1x8xf32>
    %27 = tpu.concatenate %23, %26 in 0 : vector<1x8xf32>, vector<1x8xf32> -> vector<2x8xf32>
    %c0_42 = arith.constant 0 : index
    %c0_43 = arith.constant 0 : index
    %c0_44 = arith.constant 0 : index
    %28 = vector.load %arg6[%c0_42, %c0_43, %c0_44] : memref<1x2x8xf32, #tpu.memory_space<vmem>>, vector<1x2x8xf32>
    %29 = vector.shape_cast %28 : vector<1x2x8xf32> to vector<2x8xf32>
    %30 = vector.shape_cast %27 : vector<2x8xf32> to vector<1x2x8xf32>
    tpu.vector_store %arg6[%c0_42, %c0_43, %c0_44], %30 {strides = array<i32>} : memref<1x2x8xf32, #tpu.memory_space<vmem>>, vector<1x2x8xf32>,
    return
  }
  func.func @transform_0(%arg0: i32) -> (i32, i32, i32, i32) {
    %c0_i32 = arith.constant 0 : i32
    %c0_i32_0 = arith.constant 0 : i32
    %c0_i32_1 = arith.constant 0 : i32
    %c0_i32_2 = arith.constant 0 : i32
    return %arg0, %c0_i32, %c0_i32_0, %c0_i32_1 : i32, i32, i32, i32
  }
  func.func @transform_1(%arg0: i32) -> (i32, i32) {
    %c0_i32 = arith.constant 0 : i32
    %c0_i32_0 = arith.constant 0 : i32
    %c0_i32_1 = arith.constant 0 : i32
    return %c0_i32, %c0_i32_0 : i32, i32
  }
  func.func @transform_2(%arg0: i32) -> (i32, i32) {
    %c0_i32 = arith.constant 0 : i32
    %c0_i32_0 = arith.constant 0 : i32
    %c0_i32_1 = arith.constant 0 : i32
    return %c0_i32, %c0_i32_0 : i32, i32
  }
  func.func @transform_3(%arg0: i32) -> (i32, i32) {
    %c0_i32 = arith.constant 0 : i32
    %c0_i32_0 = arith.constant 0 : i32
    %c0_i32_1 = arith.constant 0 : i32
    return %c0_i32, %c0_i32_0 : i32, i32
  }
  func.func @transform_4(%arg0: i32) -> (i32, i32, i32) {
    %c0_i32 = arith.constant 0 : i32
    %c0_i32_0 = arith.constant 0 : i32
    %c0_i32_1 = arith.constant 0 : i32
    return %arg0, %c0_i32, %c0_i32_0 : i32, i32, i32
  }
  func.func @transform_5(%arg0: i32) -> (i32, i32, i32) {
    %c0_i32 = arith.constant 0 : i32
    %c0_i32_0 = arith.constant 0 : i32
    %c0_i32_1 = arith.constant 0 : i32
    return %arg0, %c0_i32, %c0_i32_0 : i32, i32, i32
  }
}

</mosaic_0001>

<llo_original>
// kernel: tpu_custom_call.1
$region0: #{tpu_custom_call.1}
  #allocation0 [shape = 'u32[]', space=smem, size = 0x4, offset = 0x4, fixed_abs, tag = 'smem constant byte address 0x4 - core index']
  #allocation1 [shape = 'u32[144,128]{1,0:T(1,128)}', space=vmem, size = 0x12000, scoped, tag = 'internal scratch']
  #allocation2 [shape = 'bf16[18,18,4]{2,1,0:T(8,128)(2,1)}', space=vmem, size = 0x1b000, scoped, tag = 'scratch operand']
  %s0 = inlined_call_operand.vmem [shape: bf16[2,16,16,4], index: 0, kind: input, shape index: {}]
  %s1 = inlined_call_operand.vmem [shape: f32[1,4], index: 1, kind: input, shape index: {}]
  %s2 = inlined_call_operand.vmem [shape: f32[1,4], index: 2, kind: input, shape index: {}]
  %s3 = inlined_call_operand.vmem [shape: bf16[36,8], index: 3, kind: input, shape index: {}]
  %s4 = inlined_call_operand.vmem [shape: bf16[2,256,8], index: 4, kind: output, shape index: {0}]
  %s5 = inlined_call_operand.hbm [shape: f32[2,2,8], index: 5, kind: output, shape index: {1}]
  %6 = xla_tuple %s4, %s5
  %s7 = sld [smem:[#allocation0]]
  $region57: #{tpu_custom_call.1} parent=0
    _
  %s9 = ssub.s32 1, %s7
  %s10 = scalar_select 0, %s9, %s7
  $region1: #{tpu_custom_call.1} parent=0
    #allocation3 [shape = 'u8[2048]{0}', space=vmem, size = 0x800, scoped, tag = 'output window, operand 1']
    #allocation4 [shape = 's32[2]{0}', space=sflag, size = 0x8, scoped, tag = 'scoped memory for tpu_custom_call.1']
    %11 = vsyncpa [#allocation4], 0
    %s12 = scalar_lea.sflag [#allocation4], 1
    %13 = vsyncpa %s12, 0
    loop: start=0, step=1, limit=4
    $region2: #{tpu_custom_call.1} parent=1 // loop_pre_header
      _
    $region3: #{tpu_custom_call.1} parent=1 // loop_header
      %s15 = sphi 0, %s19
      %p16 = scmp.ge.s32.totalorder %s15, 4
      %s25 = sphi 0, %s27
      %s28 = sphi 0, %s25
      %s29 = sphi 0, %s28
      %s45 = sphi 0, %s29
      %s49 = sphi 0, %s49
      %s51 = sphi 0, %s49
      %s52 = sphi 0, %s51
      %s66 = sphi 0, %s52
      %s70 = sphi 0, %s70
      %s72 = sphi 0, %s70
      %s73 = sphi 0, %s72
      %s87 = sphi 0, %s73
      %s91 = sphi 0, %s91
      %s93 = sphi 0, %s91
      %s94 = sphi 0, %s93
      %s108 = sphi 0, %s94
      %s114 = sphi 0, %s116
      %s117 = sphi 0, %s114
      %s118 = sphi 0, %s117
      %s134 = sphi 0, %s118
      %s140 = sphi 0, %s142
      %s143 = sphi 0, %s140
      %s144 = sphi 0, %s143
      %s160 = sphi 0, %s144
    $region4: #{tpu_custom_call.1} parent=1 // loop_header_branch
      %18 = sbr.rel (%p16) target = $region8
    $region5: #{tpu_custom_call.1} parent=1 // loop_body
      %s20 = ssub.s32 %s15, 1
      %s21 = ssub.s32 %s15, 2
      %s22 = sadd.s32 %s15, 1
      %s23 = ssub.s32 %s15, %s22
      %p24 = scmp.eq.s32.totalorder %s23, 0
      %s26 = sadd.s32 %s25, 1
      %s27 = scalar_select %p24, %s25, %s26
      %p30 = pneg %p24
      %p31 = scmp.eq.s32.totalorder %s15, 1
      %p32 = por %p30, %p31
      %p33 = scmp.ne.s32.totalorder %s25, %s28
      %p34 = scmp.eq.s32.totalorder %s15, 0
      %p35 = por %p33, %p34
      %p36 = scmp.ne.s32.totalorder %s25, %s28
      %p37 = scmp.eq.s32.totalorder %s20, 1
      %p38 = por %p36, %p37
      %p39 = scmp.ne.s32.totalorder %s28, %s29
      %p40 = scmp.eq.s32.totalorder %s20, 0
      %p41 = por %p39, %p40
      %p42 = scmp.ne.s32.totalorder %s28, %s29
      %p43 = scmp.eq.s32.totalorder %s21, 1
      %p44 = por %p42, %p43
      %p46 = scmp.ne.s32.totalorder %s29, %s45
      %p47 = scmp.eq.s32.totalorder %s21, 0
      %p48 = por %p46, %p47
      %s50 = sadd.s32 %s49, 1
      %p53 = scmp.eq.s32.totalorder %s15, 1
      %p54 = scmp.ne.s32.totalorder %s49, %s51
      %p55 = scmp.eq.s32.totalorder %s15, 0
      %p56 = por %p54, %p55
      %p57 = scmp.ne.s32.totalorder %s49, %s51
      %p58 = scmp.eq.s32.totalorder %s20, 1
      %p59 = por %p57, %p58
      %p60 = scmp.ne.s32.totalorder %s51, %s52
      %p61 = scmp.eq.s32.totalorder %s20, 0
      %p62 = por %p60, %p61
      %p63 = scmp.ne.s32.totalorder %s51, %s52
      %p64 = scmp.eq.s32.totalorder %s21, 1
      %p65 = por %p63, %p64
      %p67 = scmp.ne.s32.totalorder %s52, %s66
      %p68 = scmp.eq.s32.totalorder %s21, 0
      %p69 = por %p67, %p68
      %s71 = sadd.s32 %s70, 1
      %p74 = scmp.eq.s32.totalorder %s15, 1
      %p75 = scmp.ne.s32.totalorder %s70, %s72
      %p76 = scmp.eq.s32.totalorder %s15, 0
      %p77 = por %p75, %p76
      %p78 = scmp.ne.s32.totalorder %s70, %s72
      %p79 = scmp.eq.s32.totalorder %s20, 1
      %p80 = por %p78, %p79
      %p81 = scmp.ne.s32.totalorder %s72, %s73
      %p82 = scmp.eq.s32.totalorder %s20, 0
      %p83 = por %p81, %p82
      %p84 = scmp.ne.s32.totalorder %s72, %s73
      %p85 = scmp.eq.s32.totalorder %s21, 1
      %p86 = por %p84, %p85
      %p88 = scmp.ne.s32.totalorder %s73, %s87
      %p89 = scmp.eq.s32.totalorder %s21, 0
      %p90 = por %p88, %p89
      %s92 = sadd.s32 %s91, 1
      %p95 = scmp.eq.s32.totalorder %s15, 1
      %p96 = scmp.ne.s32.totalorder %s91, %s93
      %p97 = scmp.eq.s32.totalorder %s15, 0
      %p98 = por %p96, %p97
      %p99 = scmp.ne.s32.totalorder %s91, %s93
      %p100 = scmp.eq.s32.totalorder %s20, 1
      %p101 = por %p99, %p100
      %p102 = scmp.ne.s32.totalorder %s93, %s94
      %p103 = scmp.eq.s32.totalorder %s20, 0
      %p104 = por %p102, %p103
      %p105 = scmp.ne.s32.totalorder %s93, %s94
      %p106 = scmp.eq.s32.totalorder %s21, 1
      %p107 = por %p105, %p106
      %p109 = scmp.ne.s32.totalorder %s94, %s108
      %p110 = scmp.eq.s32.totalorder %s21, 0
      %p111 = por %p109, %p110
      %s112 = ssub.s32 %s15, %s22
      %p113 = scmp.eq.s32.totalorder %s112, 0
      %s115 = sadd.s32 %s114, 1
      %s116 = scalar_select %p113, %s114, %s115
      %p119 = pneg %p113
      %p120 = scmp.eq.s32.totalorder %s15, 1
      %p121 = por %p119, %p120
      %p122 = scmp.ne.s32.totalorder %s114, %s117
      %p123 = scmp.eq.s32.totalorder %s15, 0
      %p124 = por %p122, %p123
      %p125 = scmp.ne.s32.totalorder %s114, %s117
      %p126 = scmp.eq.s32.totalorder %s20, 1
      %p127 = por %p125, %p126
      %p128 = scmp.ne.s32.totalorder %s117, %s118
      %p129 = scmp.eq.s32.totalorder %s20, 0
      %p130 = por %p128, %p129
      %p131 = scmp.ne.s32.totalorder %s117, %s118
      %p132 = scmp.eq.s32.totalorder %s21, 1
      %p133 = por %p131, %p132
      %p135 = scmp.ne.s32.totalorder %s118, %s134
      %p136 = scmp.eq.s32.totalorder %s21, 0
      %p137 = por %p135, %p136
      %s138 = ssub.s32 %s15, %s22
      %p139 = scmp.eq.s32.totalorder %s138, 0
      %s141 = sadd.s32 %s140, 1
      %s142 = scalar_select %p139, %s140, %s141
      %p145 = pneg %p139
      %p146 = scmp.eq.s32.totalorder %s15, 1
      %p147 = por %p145, %p146
      %p148 = scmp.ne.s32.totalorder %s140, %s143
      %p149 = scmp.eq.s32.totalorder %s15, 0
      %p150 = por %p148, %p149
      %p151 = scmp.ne.s32.totalorder %s140, %s143
      %p152 = scmp.eq.s32.totalorder %s20, 1
      %p153 = por %p151, %p152
      %p154 = scmp.ne.s32.totalorder %s143, %s144
      %p155 = scmp.eq.s32.totalorder %s20, 0
      %p156 = por %p154, %p155
      %p157 = scmp.ne.s32.totalorder %s143, %s144
      %p158 = scmp.eq.s32.totalorder %s21, 1
      %p159 = por %p157, %p158
      %p161 = scmp.ne.s32.totalorder %s144, %s160
      %p162 = scmp.eq.s32.totalorder %s21, 0
      %p163 = por %p161, %p162
      %p164 = scmp.le.s32.totalorder 1, %s15
      %p165 = scmp.lt.s32.totalorder %s15, 3
      %p166 = pnand %p164, %p165
      %p167 = pneg %p166
      // Predicated region
      $region9: #{tpu_custom_call.1} parent=5 // pred_check
        _
      $region10: #{tpu_custom_call.1} parent=5 // pred_check_branch
        %169 = sbr.rel (%p166) target = $region12
      $region11: #{tpu_custom_call.1} parent=5 // pred_region
        %s170 = ssub.s32 %s15, 1
        // Predicated region
        $region13: #{tpu_custom_call.1} parent=11 // pred_check
          %p171 = pneg %p62
        $region14: #{tpu_custom_call.1} parent=11 // pred_check_branch
          %173 = sbr.rel (%p171) target = $region16
        $region15: #{tpu_custom_call.1} parent=11 // pred_region
          _
        $region16: #{tpu_custom_call.1} parent=11 // pred_fallthru
          _
        // Predicated region
        $region17: #{tpu_custom_call.1} parent=11 // pred_check
          %p174 = pneg %p83
        $region18: #{tpu_custom_call.1} parent=11 // pred_check_branch
          %176 = sbr.rel (%p174) target = $region20
        $region19: #{tpu_custom_call.1} parent=11 // pred_region
          _
        $region20: #{tpu_custom_call.1} parent=11 // pred_fallthru
          _
        // Predicated region
        $region21: #{tpu_custom_call.1} parent=11 // pred_check
          %p177 = pneg %p104
        $region22: #{tpu_custom_call.1} parent=11 // pred_check_branch
          %179 = sbr.rel (%p177) target = $region24
        $region23: #{tpu_custom_call.1} parent=11 // pred_region
          _
        $region24: #{tpu_custom_call.1} parent=11 // pred_fallthru
          _
      $region12: #{tpu_custom_call.1} parent=5 // pred_fallthru
        _
      %p180 = scmp.lt.s32.totalorder %s15, 2
      // Predicated region
      $region25: #{tpu_custom_call.1} parent=5 // pred_check
        %p181 = pneg %p180
      $region26: #{tpu_custom_call.1} parent=5 // pred_check_branch
        %183 = sbr.rel (%p181) target = $region28
      $region27: #{tpu_custom_call.1} parent=5 // pred_region
        // Predicated region
        $region29: #{tpu_custom_call.1} parent=27 // pred_check
          %p184 = pneg %p35
        $region30: #{tpu_custom_call.1} parent=27 // pred_check_branch
          %186 = sbr.rel (%p184) target = $region32
        $region31: #{tpu_custom_call.1} parent=27 // pred_region
          %p187 = scmp.lt.s32.totalorder %s15, 1
          %s188 = scalar_select %p187, %s15, 1
          %s189 = smul.addr %s188, 32
          %s190 = smul.addr %s189, 4
          %s191 = scalar_lea.vmem %s0, %s190
        $region32: #{tpu_custom_call.1} parent=27 // pred_fallthru
          _
      $region28: #{tpu_custom_call.1} parent=5 // pred_fallthru
        _
      %p192 = scmp.le.s32.totalorder 1, %s15
      %p193 = scmp.lt.s32.totalorder %s15, 3
      %p194 = pnand %p192, %p193
      %p195 = pneg %p194
      // Predicated region
      $region33: #{tpu_custom_call.1} parent=5 // pred_check
        _
      $region34: #{tpu_custom_call.1} parent=5 // pred_check_branch
        %197 = sbr.rel (%p194) target = $region36
      $region35: #{tpu_custom_call.1} parent=5 // pred_region
        %s198 = ssub.s32 %s15, 1
        %p199 = scmp.lt.s32.totalorder %s20, 1
        %s200 = scalar_select %p199, %s20, 1
        %s201 = smul.addr %s200, 32
        %s202 = smul.addr %s201, 4
        %s203 = scalar_lea.vmem %s0, %s202
        %p204 = pneg %p41
        %p205 = pneg %p38
        %p206 = pneg %p62
        %p207 = pneg %p59
        %p208 = pneg %p83
        %p209 = pneg %p80
        %p210 = pneg %p104
        %p211 = pneg %p101
        %p212 = pneg %p130
        %p213 = pneg %p127
        %p214 = scmp.lt.s32.totalorder %s20, 1
        %s215 = scalar_select %p214, %s20, 1
        %s216 = smul.addr %s215, 32
        %s217 = smul.addr %s216, 4
        %s218 = scalar_lea.vmem %s4, %s217
        %p219 = pneg %p156
        %p220 = pneg %p153
        %s221 = sand.u32 %s143, 1
        %s222 = scalar_lea.sflag [#allocation4], %s221
        %s223 = sand.u32 %s143, 1
        %s224 = smul.addr %s223, 2
        %s225 = scalar_lea.vmem [#allocation3], %s224
        %p226 = scmp.lt.s32.totalorder %s20, 1
        %s227 = scalar_select %p226, %s20, 1
        %s228 = smul.addr %s227, 32
        %s229 = smul.addr %s228, 4
        %s230 = scalar_lea.vmem %s0, %s229
        %p231 = scmp.lt.s32.totalorder %s20, 1
        %s232 = scalar_select %p231, %s20, 1
        %s233 = smul.addr %s232, 32
        %s234 = smul.addr %s233, 4
        %s235 = scalar_lea.vmem %s4, %s234
        %v237 = vld [vmem:[%s230] sm:$0xf]
        %v238 = vld [vmem:[%s230 + $0x4] sm:$0xf]
        %v239 = vld [vmem:[%s230 + $0x8] sm:$0xf]
        %v240 = vld [vmem:[%s230 + $0xc] sm:$0xf]
        %v241 = vld [vmem:[%s230 + $0x10] sm:$0xf]
        %v242 = vld [vmem:[%s230 + $0x14] sm:$0xf]
        %v243 = vld [vmem:[%s230 + $0x18] sm:$0xf]
        %v244 = vld [vmem:[%s230 + $0x1c] sm:$0xf]
        %v245 = vld [vmem:[%s230 + $0x20] sm:$0xf]
        %v246 = vld [vmem:[%s230 + $0x24] sm:$0xf]
        %v247 = vld [vmem:[%s230 + $0x28] sm:$0xf]
        %v248 = vld [vmem:[%s230 + $0x2c] sm:$0xf]
        %v249 = vld [vmem:[%s230 + $0x30] sm:$0xf]
        %v250 = vld [vmem:[%s230 + $0x34] sm:$0xf]
        %v251 = vld [vmem:[%s230 + $0x38] sm:$0xf]
        %v252 = vld [vmem:[%s230 + $0x3c] sm:$0xf]
        %v253 = vld [vmem:[%s230 + $0x40] sm:$0xf]
        %v254 = vld [vmem:[%s230 + $0x44] sm:$0xf]
        %v255 = vld [vmem:[%s230 + $0x48] sm:$0xf]
        %v256 = vld [vmem:[%s230 + $0x4c] sm:$0xf]
        %v257 = vld [vmem:[%s230 + $0x50] sm:$0xf]
        %v258 = vld [vmem:[%s230 + $0x54] sm:$0xf]
        %v259 = vld [vmem:[%s230 + $0x58] sm:$0xf]
        %v260 = vld [vmem:[%s230 + $0x5c] sm:$0xf]
        %v261 = vld [vmem:[%s230 + $0x60] sm:$0xf]
        %v262 = vld [vmem:[%s230 + $0x64] sm:$0xf]
        %v263 = vld [vmem:[%s230 + $0x68] sm:$0xf]
        %v264 = vld [vmem:[%s230 + $0x6c] sm:$0xf]
        %v265 = vld [vmem:[%s230 + $0x70] sm:$0xf]
        %v266 = vld [vmem:[%s230 + $0x74] sm:$0xf]
        %v267 = vld [vmem:[%s230 + $0x78] sm:$0xf]
        %v268 = vld [vmem:[%s230 + $0x7c] sm:$0xf]
        %vm269 = vcmask 27648
        %270 = vst.msk [vmem:[#allocation2] sm:$0xf] %vm269, 0
        %271 = vst.msk [vmem:[#allocation2 + $0x4] sm:$0xf] %vm269, 0
        %vm272 = vcmask 24576
        %273 = vst.msk [vmem:[#allocation2 + $0x8] sm:$0x1] %vm272, 0
        %274 = vst.msk [vmem:[#allocation2 + $0xc] sm:$0xf] %vm269, 0
        %275 = vst.msk [vmem:[#allocation2 + $0x10] sm:$0xf] %vm269, 0
        %276 = vst.msk [vmem:[#allocation2 + $0x14] sm:$0x1] %vm272, 0
        %277 = vst.msk [vmem:[#allocation2 + $0x18] sm:$0xf] %vm269, 0
        %278 = vst.msk [vmem:[#allocation2 + $0x1c] sm:$0xf] %vm269, 0
        %279 = vst.msk [vmem:[#allocation2 + $0x20] sm:$0x1] %vm272, 0
        %280 = vst.msk [vmem:[#allocation2 + $0x24] sm:$0xf] %vm269, 0
        %281 = vst.msk [vmem:[#allocation2 + $0x28] sm:$0xf] %vm269, 0
        %282 = vst.msk [vmem:[#allocation2 + $0x2c] sm:$0x1] %vm272, 0
        %283 = vst.msk [vmem:[#allocation2 + $0x30] sm:$0xf] %vm269, 0
        %284 = vst.msk [vmem:[#allocation2 + $0x34] sm:$0xf] %vm269, 0
        %285 = vst.msk [vmem:[#allocation2 + $0x38] sm:$0x1] %vm272, 0
        %286 = vst.msk [vmem:[#allocation2 + $0x3c] sm:$0xf] %vm269, 0
        %287 = vst.msk [vmem:[#allocation2 + $0x40] sm:$0xf] %vm269, 0
        %288 = vst.msk [vmem:[#allocation2 + $0x44] sm:$0x1] %vm272, 0
        %289 = vst.msk [vmem:[#allocation2 + $0x48] sm:$0xf] %vm269, 0
        %290 = vst.msk [vmem:[#allocation2 + $0x4c] sm:$0xf] %vm269, 0
        %291 = vst.msk [vmem:[#allocation2 + $0x50] sm:$0x1] %vm272, 0
        %292 = vst.msk [vmem:[#allocation2 + $0x54] sm:$0xf] %vm269, 0
        %293 = vst.msk [vmem:[#allocation2 + $0x58] sm:$0xf] %vm269, 0
        %294 = vst.msk [vmem:[#allocation2 + $0x5c] sm:$0x1] %vm272, 0
        %295 = vst.msk [vmem:[#allocation2 + $0x60] sm:$0xf] %vm269, 0
        %296 = vst.msk [vmem:[#allocation2 + $0x64] sm:$0xf] %vm269, 0
        %297 = vst.msk [vmem:[#allocation2 + $0x68] sm:$0x1] %vm272, 0
        %298 = vst.msk [vmem:[#allocation2 + $0x6c] sm:$0xf] %vm269, 0
        %299 = vst.msk [vmem:[#allocation2 + $0x70] sm:$0xf] %vm269, 0
        %300 = vst.msk [vmem:[#allocation2 + $0x74] sm:$0x1] %vm272, 0
        %301 = vst.msk [vmem:[#allocation2 + $0x78] sm:$0xf] %vm269, 0
        %302 = vst.msk [vmem:[#allocation2 + $0x7c] sm:$0xf] %vm269, 0
        %303 = vst.msk [vmem:[#allocation2 + $0x80] sm:$0x1] %vm272, 0
        %304 = vst.msk [vmem:[#allocation2 + $0x84] sm:$0xf] %vm269, 0
        %305 = vst.msk [vmem:[#allocation2 + $0x88] sm:$0xf] %vm269, 0
        %306 = vst.msk [vmem:[#allocation2 + $0x8c] sm:$0x1] %vm272, 0
        %307 = vst.msk [vmem:[#allocation2 + $0x90] sm:$0xf] %vm269, 0
        %308 = vst.msk [vmem:[#allocation2 + $0x94] sm:$0xf] %vm269, 0
        %309 = vst.msk [vmem:[#allocation2 + $0x98] sm:$0x1] %vm272, 0
        %310 = vst.msk [vmem:[#allocation2 + $0x9c] sm:$0xf] %vm269, 0
        %311 = vst.msk [vmem:[#allocation2 + $0xa0] sm:$0xf] %vm269, 0
        %312 = vst.msk [vmem:[#allocation2 + $0xa4] sm:$0x1] %vm272, 0
        %313 = vst.msk [vmem:[#allocation2 + $0xa8] sm:$0xf] %vm269, 0
        %314 = vst.msk [vmem:[#allocation2 + $0xac] sm:$0xf] %vm269, 0
        %315 = vst.msk [vmem:[#allocation2 + $0xb0] sm:$0x1] %vm272, 0
        %316 = vst.msk [vmem:[#allocation2 + $0xb4] sm:$0xf] %vm269, 0
        %317 = vst.msk [vmem:[#allocation2 + $0xb8] sm:$0xf] %vm269, 0
        %318 = vst.msk [vmem:[#allocation2 + $0xbc] sm:$0x1] %vm272, 0
        %319 = vst.msk [vmem:[#allocation2 + $0xc0] sm:$0xf] %vm269, 0
        %320 = vst.msk [vmem:[#allocation2 + $0xc4] sm:$0xf] %vm269, 0
        %321 = vst.msk [vmem:[#allocation2 + $0xc8] sm:$0x1] %vm272, 0
        %322 = vst.msk [vmem:[#allocation2 + $0xcc] sm:$0xf] %vm269, 0
        %323 = vst.msk [vmem:[#allocation2 + $0xd0] sm:$0xf] %vm269, 0
        %324 = vst.msk [vmem:[#allocation2 + $0xd4] sm:$0x1] %vm272, 0
        %vm325 = vsmask.f32 256
        %vm326 = vsmask.f32 4368
        %vm327 = vmor %vm325, %vm326
        %v329 = vshrl.u32 %v237, 16
        %v331 = vrot.slane %v329, 7
        %v332 = vshll.u32 %v237, 16
        %v334 = vor.u32 %v331, %v332
        %v335 = vrot.slane %v331, 4
        %v337 = vshrl.u32 %v238, 16
        %v339 = vrot.slane %v337, 7
        %v340 = vshll.u32 %v238, 16
        %v342 = vor.u32 %v339, %v340
        %v343 = vsel %vm327, %v335, %v342
        %v344 = vrot.slane %v339, 4
        %v346 = vshrl.u32 %v239, 16
        %v348 = vrot.slane %v346, 7
        %v349 = vshll.u32 %v239, 16
        %v351 = vor.u32 %v348, %v349
        %v352 = vrot.slane %v348, 4
        %v354 = vshrl.u32 %v240, 16
        %v356 = vrot.slane %v354, 7
        %v357 = vshll.u32 %v240, 16
        %v359 = vor.u32 %v356, %v357
        %v360 = vsel %vm327, %v352, %v359
        %v361 = vrot.slane %v356, 4
        %v363 = vshrl.u32 %v241, 16
        %v365 = vrot.slane %v363, 7
        %v366 = vshll.u32 %v241, 16
        %v368 = vor.u32 %v365, %v366
        %v369 = vrot.slane %v365, 4
        %v371 = vshrl.u32 %v242, 16
        %v373 = vrot.slane %v371, 7
        %v374 = vshll.u32 %v242, 16
        %v376 = vor.u32 %v373, %v374
        %v377 = vsel %vm327, %v369, %v376
        %v378 = vrot.slane %v373, 4
        %v380 = vshrl.u32 %v243, 16
        %v382 = vrot.slane %v380, 7
        %v383 = vshll.u32 %v243, 16
        %v385 = vor.u32 %v382, %v383
        %v386 = vrot.slane %v382, 4
        %v388 = vshrl.u32 %v244, 16
        %v390 = vrot.slane %v388, 7
        %v391 = vshll.u32 %v244, 16
        %v393 = vor.u32 %v390, %v391
        %v394 = vsel %vm327, %v386, %v393
        %v395 = vrot.slane %v390, 4
        %v397 = vshrl.u32 %v245, 16
        %v399 = vrot.slane %v397, 7
        %v400 = vshll.u32 %v245, 16
        %v402 = vor.u32 %v399, %v400
        %v403 = vrot.slane %v399, 4
        %v405 = vshrl.u32 %v246, 16
        %v407 = vrot.slane %v405, 7
        %v408 = vshll.u32 %v246, 16
        %v410 = vor.u32 %v407, %v408
        %v411 = vsel %vm327, %v403, %v410
        %v412 = vrot.slane %v407, 4
        %v414 = vshrl.u32 %v247, 16
        %v416 = vrot.slane %v414, 7
        %v417 = vshll.u32 %v247, 16
        %v419 = vor.u32 %v416, %v417
        %v420 = vrot.slane %v416, 4
        %v422 = vshrl.u32 %v248, 16
        %v424 = vrot.slane %v422, 7
        %v425 = vshll.u32 %v248, 16
        %v427 = vor.u32 %v424, %v425
        %v428 = vsel %vm327, %v420, %v427
        %v429 = vrot.slane %v424, 4
        %v431 = vshrl.u32 %v249, 16
        %v433 = vrot.slane %v431, 7
        %v434 = vshll.u32 %v249, 16
        %v436 = vor.u32 %v433, %v434
        %v437 = vrot.slane %v433, 4
        %v439 = vshrl.u32 %v250, 16
        %v441 = vrot.slane %v439, 7
        %v442 = vshll.u32 %v250, 16
        %v444 = vor.u32 %v441, %v442
        %v445 = vsel %vm327, %v437, %v444
        %v446 = vrot.slane %v441, 4
        %v448 = vshrl.u32 %v251, 16
        %v450 = vrot.slane %v448, 7
        %v451 = vshll.u32 %v251, 16
        %v453 = vor.u32 %v450, %v451
        %v454 = vrot.slane %v450, 4
        %v456 = vshrl.u32 %v252, 16
        %v458 = vrot.slane %v456, 7
        %v459 = vshll.u32 %v252, 16
        %v461 = vor.u32 %v458, %v459
        %v462 = vsel %vm327, %v454, %v461
        %v463 = vrot.slane %v458, 4
        %v465 = vshrl.u32 %v253, 16
        %v467 = vrot.slane %v465, 7
        %v468 = vshll.u32 %v253, 16
        %v470 = vor.u32 %v467, %v468
        %v471 = vrot.slane %v467, 4
        %v473 = vshrl.u32 %v254, 16
        %v475 = vrot.slane %v473, 7
        %v476 = vshll.u32 %v254, 16
        %v478 = vor.u32 %v475, %v476
        %v479 = vsel %vm327, %v471, %v478
        %v480 = vrot.slane %v475, 4
        %v482 = vshrl.u32 %v255, 16
        %v484 = vrot.slane %v482, 7
        %v485 = vshll.u32 %v255, 16
        %v487 = vor.u32 %v484, %v485
        %v488 = vrot.slane %v484, 4
        %v490 = vshrl.u32 %v256, 16
        %v492 = vrot.slane %v490, 7
        %v493 = vshll.u32 %v256, 16
        %v495 = vor.u32 %v492, %v493
        %v496 = vsel %vm327, %v488, %v495
        %v497 = vrot.slane %v492, 4
        %v499 = vshrl.u32 %v257, 16
        %v501 = vrot.slane %v499, 7
        %v502 = vshll.u32 %v257, 16
        %v504 = vor.u32 %v501, %v502
        %v505 = vrot.slane %v501, 4
        %v507 = vshrl.u32 %v258, 16
        %v509 = vrot.slane %v507, 7
        %v510 = vshll.u32 %v258, 16
        %v512 = vor.u32 %v509, %v510
        %v513 = vsel %vm327, %v505, %v512
        %v514 = vrot.slane %v509, 4
        %v516 = vshrl.u32 %v259, 16
        %v518 = vrot.slane %v516, 7
        %v519 = vshll.u32 %v259, 16
        %v521 = vor.u32 %v518, %v519
        %v522 = vrot.slane %v518, 4
        %v524 = vshrl.u32 %v260, 16
        %v526 = vrot.slane %v524, 7
        %v527 = vshll.u32 %v260, 16
        %v529 = vor.u32 %v526, %v527
        %v530 = vsel %vm327, %v522, %v529
        %v531 = vrot.slane %v526, 4
        %v533 = vshrl.u32 %v261, 16
        %v535 = vrot.slane %v533, 7
        %v536 = vshll.u32 %v261, 16
        %v538 = vor.u32 %v535, %v536
        %v539 = vrot.slane %v535, 4
        %v541 = vshrl.u32 %v262, 16
        %v543 = vrot.slane %v541, 7
        %v544 = vshll.u32 %v262, 16
        %v546 = vor.u32 %v543, %v544
        %v547 = vsel %vm327, %v539, %v546
        %v548 = vrot.slane %v543, 4
        %v550 = vshrl.u32 %v263, 16
        %v552 = vrot.slane %v550, 7
        %v553 = vshll.u32 %v263, 16
        %v555 = vor.u32 %v552, %v553
        %v556 = vrot.slane %v552, 4
        %v558 = vshrl.u32 %v264, 16
        %v560 = vrot.slane %v558, 7
        %v561 = vshll.u32 %v264, 16
        %v563 = vor.u32 %v560, %v561
        %v564 = vsel %vm327, %v556, %v563
        %v565 = vrot.slane %v560, 4
        %v567 = vshrl.u32 %v265, 16
        %v569 = vrot.slane %v567, 7
        %v570 = vshll.u32 %v265, 16
        %v572 = vor.u32 %v569, %v570
        %v573 = vrot.slane %v569, 4
        %v575 = vshrl.u32 %v266, 16
        %v577 = vrot.slane %v575, 7
        %v578 = vshll.u32 %v266, 16
        %v580 = vor.u32 %v577, %v578
        %v581 = vsel %vm327, %v573, %v580
        %v582 = vrot.slane %v577, 4
        %v584 = vshrl.u32 %v267, 16
        %v586 = vrot.slane %v584, 7
        %v587 = vshll.u32 %v267, 16
        %v589 = vor.u32 %v586, %v587
        %v590 = vrot.slane %v586, 4
        %v592 = vshrl.u32 %v268, 16
        %v594 = vrot.slane %v592, 7
        %v595 = vshll.u32 %v268, 16
        %v597 = vor.u32 %v594, %v595
        %v598 = vsel %vm327, %v590, %v597
        %v599 = vrot.slane %v594, 4
        %s648 = scalar_lea.vmem [#allocation2], 12
        %vm649 = vcmask 27648
        %vm650 = vsmask.f32 7938
        %vm651 = vmand %vm649, %vm650
        %v652 = vld [vmem:[%s648] sm:$0xf]
        %v653 = vsel %vm651, %v334, %v652
        %654 = vst [vmem:[%s648] sm:$0xf] %v653
        %655 = vst.msk [vmem:[%s648 + $0x4] sm:$0xf] %vm269, %v343
        %vm656 = vcmask 24576
        %vm657 = vmand %vm656, %vm325
        %v658 = vld [vmem:[%s648 + $0x8] sm:$0x1]
        %v659 = vsel %vm657, %v344, %v658
        %660 = vst [vmem:[%s648 + $0x8] sm:$0x1] %v659
        %v661 = vld [vmem:[%s648 + $0xc] sm:$0xf]
        %v662 = vsel %vm651, %v351, %v661
        %663 = vst [vmem:[%s648 + $0xc] sm:$0xf] %v662
        %664 = vst.msk [vmem:[%s648 + $0x10] sm:$0xf] %vm269, %v360
        %v665 = vld [vmem:[%s648 + $0x14] sm:$0x1]
        %v666 = vsel %vm657, %v361, %v665
        %667 = vst [vmem:[%s648 + $0x14] sm:$0x1] %v666
        %v668 = vld [vmem:[%s648 + $0x18] sm:$0xf]
        %v669 = vsel %vm651, %v368, %v668
        %670 = vst [vmem:[%s648 + $0x18] sm:$0xf] %v669
        %671 = vst.msk [vmem:[%s648 + $0x1c] sm:$0xf] %vm269, %v377
        %v672 = vld [vmem:[%s648 + $0x20] sm:$0x1]
        %v673 = vsel %vm657, %v378, %v672
        %674 = vst [vmem:[%s648 + $0x20] sm:$0x1] %v673
        %v675 = vld [vmem:[%s648 + $0x24] sm:$0xf]
        %v676 = vsel %vm651, %v385, %v675
        %677 = vst [vmem:[%s648 + $0x24] sm:$0xf] %v676
        %678 = vst.msk [vmem:[%s648 + $0x28] sm:$0xf] %vm269, %v394
        %v679 = vld [vmem:[%s648 + $0x2c] sm:$0x1]
        %v680 = vsel %vm657, %v395, %v679
        %681 = vst [vmem:[%s648 + $0x2c] sm:$0x1] %v680
        %v682 = vld [vmem:[%s648 + $0x30] sm:$0xf]
        %v683 = vsel %vm651, %v402, %v682
        %684 = vst [vmem:[%s648 + $0x30] sm:$0xf] %v683
        %685 = vst.msk [vmem:[%s648 + $0x34] sm:$0xf] %vm269, %v411
        %v686 = vld [vmem:[%s648 + $0x38] sm:$0x1]
        %v687 = vsel %vm657, %v412, %v686
        %688 = vst [vmem:[%s648 + $0x38] sm:$0x1] %v687
        %v689 = vld [vmem:[%s648 + $0x3c] sm:$0xf]
        %v690 = vsel %vm651, %v419, %v689
        %691 = vst [vmem:[%s648 + $0x3c] sm:$0xf] %v690
        %692 = vst.msk [vmem:[%s648 + $0x40] sm:$0xf] %vm269, %v428
        %v693 = vld [vmem:[%s648 + $0x44] sm:$0x1]
        %v694 = vsel %vm657, %v429, %v693
        %695 = vst [vmem:[%s648 + $0x44] sm:$0x1] %v694
        %v696 = vld [vmem:[%s648 + $0x48] sm:$0xf]
        %v697 = vsel %vm651, %v436, %v696
        %698 = vst [vmem:[%s648 + $0x48] sm:$0xf] %v697
        %699 = vst.msk [vmem:[%s648 + $0x4c] sm:$0xf] %vm269, %v445
        %v700 = vld [vmem:[%s648 + $0x50] sm:$0x1]
        %v701 = vsel %vm657, %v446, %v700
        %702 = vst [vmem:[%s648 + $0x50] sm:$0x1] %v701
        %v703 = vld [vmem:[%s648 + $0x54] sm:$0xf]
        %v704 = vsel %vm651, %v453, %v703
        %705 = vst [vmem:[%s648 + $0x54] sm:$0xf] %v704
        %706 = vst.msk [vmem:[%s648 + $0x58] sm:$0xf] %vm269, %v462
        %v707 = vld [vmem:[%s648 + $0x5c] sm:$0x1]
        %v708 = vsel %vm657, %v463, %v707
        %709 = vst [vmem:[%s648 + $0x5c] sm:$0x1] %v708
        %v710 = vld [vmem:[%s648 + $0x60] sm:$0xf]
        %v711 = vsel %vm651, %v470, %v710
        %712 = vst [vmem:[%s648 + $0x60] sm:$0xf] %v711
        %713 = vst.msk [vmem:[%s648 + $0x64] sm:$0xf] %vm269, %v479
        %v714 = vld [vmem:[%s648 + $0x68] sm:$0x1]
        %v715 = vsel %vm657, %v480, %v714
        %716 = vst [vmem:[%s648 + $0x68] sm:$0x1] %v715
        %v717 = vld [vmem:[%s648 + $0x6c] sm:$0xf]
        %v718 = vsel %vm651, %v487, %v717
        %719 = vst [vmem:[%s648 + $0x6c] sm:$0xf] %v718
        %720 = vst.msk [vmem:[%s648 + $0x70] sm:$0xf] %vm269, %v496
        %v721 = vld [vmem:[%s648 + $0x74] sm:$0x1]
        %v722 = vsel %vm657, %v497, %v721
        %723 = vst [vmem:[%s648 + $0x74] sm:$0x1] %v722
        %v724 = vld [vmem:[%s648 + $0x78] sm:$0xf]
        %v725 = vsel %vm651, %v504, %v724
        %726 = vst [vmem:[%s648 + $0x78] sm:$0xf] %v725
        %727 = vst.msk [vmem:[%s648 + $0x7c] sm:$0xf] %vm269, %v513
        %v728 = vld [vmem:[%s648 + $0x80] sm:$0x1]
        %v729 = vsel %vm657, %v514, %v728
        %730 = vst [vmem:[%s648 + $0x80] sm:$0x1] %v729
        %v731 = vld [vmem:[%s648 + $0x84] sm:$0xf]
        %v732 = vsel %vm651, %v521, %v731
        %733 = vst [vmem:[%s648 + $0x84] sm:$0xf] %v732
        %734 = vst.msk [vmem:[%s648 + $0x88] sm:$0xf] %vm269, %v530
        %v735 = vld [vmem:[%s648 + $0x8c] sm:$0x1]
        %v736 = vsel %vm657, %v531, %v735
        %737 = vst [vmem:[%s648 + $0x8c] sm:$0x1] %v736
        %v738 = vld [vmem:[%s648 + $0x90] sm:$0xf]
        %v739 = vsel %vm651, %v538, %v738
        %740 = vst [vmem:[%s648 + $0x90] sm:$0xf] %v739
        %741 = vst.msk [vmem:[%s648 + $0x94] sm:$0xf] %vm269, %v547
        %v742 = vld [vmem:[%s648 + $0x98] sm:$0x1]
        %v743 = vsel %vm657, %v548, %v742
        %744 = vst [vmem:[%s648 + $0x98] sm:$0x1] %v743
        %v745 = vld [vmem:[%s648 + $0x9c] sm:$0xf]
        %v746 = vsel %vm651, %v555, %v745
        %747 = vst [vmem:[%s648 + $0x9c] sm:$0xf] %v746
        %748 = vst.msk [vmem:[%s648 + $0xa0] sm:$0xf] %vm269, %v564
        %v749 = vld [vmem:[%s648 + $0xa4] sm:$0x1]
        %v750 = vsel %vm657, %v565, %v749
        %751 = vst [vmem:[%s648 + $0xa4] sm:$0x1] %v750
        %v752 = vld [vmem:[%s648 + $0xa8] sm:$0xf]
        %v753 = vsel %vm651, %v572, %v752
        %754 = vst [vmem:[%s648 + $0xa8] sm:$0xf] %v753
        %755 = vst.msk [vmem:[%s648 + $0xac] sm:$0xf] %vm269, %v581
        %v756 = vld [vmem:[%s648 + $0xb0] sm:$0x1]
        %v757 = vsel %vm657, %v582, %v756
        %758 = vst [vmem:[%s648 + $0xb0] sm:$0x1] %v757
        %v759 = vld [vmem:[%s648 + $0xb4] sm:$0xf]
        %v760 = vsel %vm651, %v589, %v759
        %761 = vst [vmem:[%s648 + $0xb4] sm:$0xf] %v760
        %762 = vst.msk [vmem:[%s648 + $0xb8] sm:$0xf] %vm269, %v598
        %v763 = vld [vmem:[%s648 + $0xbc] sm:$0x1]
        %v764 = vsel %vm657, %v599, %v763
        %765 = vst [vmem:[%s648 + $0xbc] sm:$0x1] %v764
        %v766 = vld [vmem:[#allocation2] sm:$0xf]
        %v767 = vld [vmem:[#allocation2 + $0x4] sm:$0xf]
        %v768 = vld [vmem:[#allocation2 + $0xc] sm:$0xf]
        %v769 = vld [vmem:[#allocation2 + $0x10] sm:$0xf]
        %v770 = vld [vmem:[#allocation2 + $0x18] sm:$0xf]
        %v771 = vld [vmem:[#allocation2 + $0x1c] sm:$0xf]
        %v772 = vld [vmem:[#allocation2 + $0x24] sm:$0xf]
        %v773 = vld [vmem:[#allocation2 + $0x28] sm:$0xf]
        %v774 = vld [vmem:[#allocation2 + $0x30] sm:$0xf]
        %v775 = vld [vmem:[#allocation2 + $0x34] sm:$0xf]
        %v776 = vld [vmem:[#allocation2 + $0x3c] sm:$0xf]
        %v777 = vld [vmem:[#allocation2 + $0x40] sm:$0xf]
        %v778 = vld [vmem:[#allocation2 + $0x48] sm:$0xf]
        %v779 = vld [vmem:[#allocation2 + $0x4c] sm:$0xf]
        %v780 = vld [vmem:[#allocation2 + $0x54] sm:$0xf]
        %v781 = vld [vmem:[#allocation2 + $0x58] sm:$0xf]
        %v782 = vld [vmem:[#allocation2 + $0x60] sm:$0xf]
        %v783 = vld [vmem:[#allocation2 + $0x64] sm:$0xf]
        %v784 = vld [vmem:[#allocation2 + $0x6c] sm:$0xf]
        %v785 = vld [vmem:[#allocation2 + $0x70] sm:$0xf]
        %v786 = vld [vmem:[#allocation2 + $0x78] sm:$0xf]
        %v787 = vld [vmem:[#allocation2 + $0x7c] sm:$0xf]
        %v788 = vld [vmem:[#allocation2 + $0x84] sm:$0xf]
        %v789 = vld [vmem:[#allocation2 + $0x88] sm:$0xf]
        %v790 = vld [vmem:[#allocation2 + $0x90] sm:$0xf]
        %v791 = vld [vmem:[#allocation2 + $0x94] sm:$0xf]
        %v792 = vld [vmem:[#allocation2 + $0x9c] sm:$0xf]
        %v793 = vld [vmem:[#allocation2 + $0xa0] sm:$0xf]
        %v794 = vld [vmem:[#allocation2 + $0xa8] sm:$0xf]
        %v795 = vld [vmem:[#allocation2 + $0xac] sm:$0xf]
        %v796 = vld [vmem:[#allocation2 + $0xb4] sm:$0xf]
        %v797 = vld [vmem:[#allocation2 + $0xb8] sm:$0xf]
        %v798 = vld [vmem:[#allocation2 + $0x8] sm:$0x1]
        %v799 = vld [vmem:[#allocation2 + $0x14] sm:$0x1]
        %v800 = vld [vmem:[#allocation2 + $0x20] sm:$0x1]
        %v801 = vld [vmem:[#allocation2 + $0x2c] sm:$0x1]
        %v802 = vld [vmem:[#allocation2 + $0x38] sm:$0x1]
        %v803 = vld [vmem:[#allocation2 + $0x44] sm:$0x1]
        %v804 = vld [vmem:[#allocation2 + $0x50] sm:$0x1]
        %v805 = vld [vmem:[#allocation2 + $0x5c] sm:$0x1]
        %v806 = vld [vmem:[#allocation2 + $0x68] sm:$0x1]
        %v807 = vld [vmem:[#allocation2 + $0x74] sm:$0x1]
        %v808 = vld [vmem:[#allocation2 + $0x80] sm:$0x1]
        %v809 = vld [vmem:[#allocation2 + $0x8c] sm:$0x1]
        %v810 = vld [vmem:[#allocation2 + $0x98] sm:$0x1]
        %v811 = vld [vmem:[#allocation2 + $0xa4] sm:$0x1]
        %v812 = vld [vmem:[#allocation2 + $0xb0] sm:$0x1]
        %v813 = vld [vmem:[#allocation2 + $0xbc] sm:$0x1]
        %v814 = vld [vmem:[#allocation2] sm:$0xe]
        %v815 = vld [vmem:[#allocation2 + $0xc] sm:$0xe]
        %v816 = vld [vmem:[#allocation2 + $0x18] sm:$0xe]
        %v817 = vld [vmem:[#allocation2 + $0x24] sm:$0xe]
        %v818 = vld [vmem:[#allocation2 + $0x30] sm:$0xe]
        %v819 = vld [vmem:[#allocation2 + $0x3c] sm:$0xe]
        %v820 = vld [vmem:[#allocation2 + $0x48] sm:$0xe]
        %v821 = vld [vmem:[#allocation2 + $0x54] sm:$0xe]
        %v822 = vld [vmem:[#allocation2 + $0x60] sm:$0xe]
        %v823 = vld [vmem:[#allocation2 + $0x6c] sm:$0xe]
        %v824 = vld [vmem:[#allocation2 + $0x78] sm:$0xe]
        %v825 = vld [vmem:[#allocation2 + $0x84] sm:$0xe]
        %v826 = vld [vmem:[#allocation2 + $0x90] sm:$0xe]
        %v827 = vld [vmem:[#allocation2 + $0x9c] sm:$0xe]
        %v828 = vld [vmem:[#allocation2 + $0xa8] sm:$0xe]
        %v829 = vld [vmem:[#allocation2 + $0xb4] sm:$0xe]
        %v830 = vld [vmem:[%s648] sm:$0xf]
        %v831 = vld [vmem:[%s648 + $0x4] sm:$0xf]
        %v832 = vld [vmem:[%s648 + $0xc] sm:$0xf]
        %v833 = vld [vmem:[%s648 + $0x10] sm:$0xf]
        %v834 = vld [vmem:[%s648 + $0x18] sm:$0xf]
        %v835 = vld [vmem:[%s648 + $0x1c] sm:$0xf]
        %v836 = vld [vmem:[%s648 + $0x24] sm:$0xf]
        %v837 = vld [vmem:[%s648 + $0x28] sm:$0xf]
        %v838 = vld [vmem:[%s648 + $0x30] sm:$0xf]
        %v839 = vld [vmem:[%s648 + $0x34] sm:$0xf]
        %v840 = vld [vmem:[%s648 + $0x3c] sm:$0xf]
        %v841 = vld [vmem:[%s648 + $0x40] sm:$0xf]
        %v842 = vld [vmem:[%s648 + $0x48] sm:$0xf]
        %v843 = vld [vmem:[%s648 + $0x4c] sm:$0xf]
        %v844 = vld [vmem:[%s648 + $0x54] sm:$0xf]
        %v845 = vld [vmem:[%s648 + $0x58] sm:$0xf]
        %v846 = vld [vmem:[%s648 + $0x60] sm:$0xf]
        %v847 = vld [vmem:[%s648 + $0x64] sm:$0xf]
        %v848 = vld [vmem:[%s648 + $0x6c] sm:$0xf]
        %v849 = vld [vmem:[%s648 + $0x70] sm:$0xf]
        %v850 = vld [vmem:[%s648 + $0x78] sm:$0xf]
        %v851 = vld [vmem:[%s648 + $0x7c] sm:$0xf]
        %v852 = vld [vmem:[%s648 + $0x84] sm:$0xf]
        %v853 = vld [vmem:[%s648 + $0x88] sm:$0xf]
        %v854 = vld [vmem:[%s648 + $0x90] sm:$0xf]
        %v855 = vld [vmem:[%s648 + $0x94] sm:$0xf]
        %v856 = vld [vmem:[%s648 + $0x9c] sm:$0xf]
        %v857 = vld [vmem:[%s648 + $0xa0] sm:$0xf]
        %v858 = vld [vmem:[%s648 + $0xa8] sm:$0xf]
        %v859 = vld [vmem:[%s648 + $0xac] sm:$0xf]
        %v860 = vld [vmem:[%s648 + $0xb4] sm:$0xf]
        %v861 = vld [vmem:[%s648 + $0xb8] sm:$0xf]
        %v862 = vld [vmem:[%s648 + $0x8] sm:$0x1]
        %v863 = vld [vmem:[%s648 + $0x14] sm:$0x1]
        %v864 = vld [vmem:[%s648 + $0x20] sm:$0x1]
        %v865 = vld [vmem:[%s648 + $0x2c] sm:$0x1]
        %v866 = vld [vmem:[%s648 + $0x38] sm:$0x1]
        %v867 = vld [vmem:[%s648 + $0x44] sm:$0x1]
        %v868 = vld [vmem:[%s648 + $0x50] sm:$0x1]
        %v869 = vld [vmem:[%s648 + $0x5c] sm:$0x1]
        %v870 = vld [vmem:[%s648 + $0x68] sm:$0x1]
        %v871 = vld [vmem:[%s648 + $0x74] sm:$0x1]
        %v872 = vld [vmem:[%s648 + $0x80] sm:$0x1]
        %v873 = vld [vmem:[%s648 + $0x8c] sm:$0x1]
        %v874 = vld [vmem:[%s648 + $0x98] sm:$0x1]
        %v875 = vld [vmem:[%s648 + $0xa4] sm:$0x1]
        %v876 = vld [vmem:[%s648 + $0xb0] sm:$0x1]
        %v877 = vld [vmem:[%s648 + $0xbc] sm:$0x1]
        %v878 = vld [vmem:[%s648] sm:$0xe]
        %v879 = vld [vmem:[%s648 + $0xc] sm:$0xe]
        %v880 = vld [vmem:[%s648 + $0x18] sm:$0xe]
        %v881 = vld [vmem:[%s648 + $0x24] sm:$0xe]
        %v882 = vld [vmem:[%s648 + $0x30] sm:$0xe]
        %v883 = vld [vmem:[%s648 + $0x3c] sm:$0xe]
        %v884 = vld [vmem:[%s648 + $0x48] sm:$0xe]
        %v885 = vld [vmem:[%s648 + $0x54] sm:$0xe]
        %v886 = vld [vmem:[%s648 + $0x60] sm:$0xe]
        %v887 = vld [vmem:[%s648 + $0x6c] sm:$0xe]
        %v888 = vld [vmem:[%s648 + $0x78] sm:$0xe]
        %v889 = vld [vmem:[%s648 + $0x84] sm:$0xe]
        %v890 = vld [vmem:[%s648 + $0x90] sm:$0xe]
        %v891 = vld [vmem:[%s648 + $0x9c] sm:$0xe]
        %v892 = vld [vmem:[%s648 + $0xa8] sm:$0xe]
        %v893 = vld [vmem:[%s648 + $0xb4] sm:$0xe]
        %s894 = scalar_lea.vmem [#allocation2], 24
        %v895 = vld [vmem:[%s894] sm:$0xf]
        %v896 = vld [vmem:[%s894 + $0x4] sm:$0xf]
        %v897 = vld [vmem:[%s894 + $0xc] sm:$0xf]
        %v898 = vld [vmem:[%s894 + $0x10] sm:$0xf]
        %v899 = vld [vmem:[%s894 + $0x18] sm:$0xf]
        %v900 = vld [vmem:[%s894 + $0x1c] sm:$0xf]
        %v901 = vld [vmem:[%s894 + $0x24] sm:$0xf]
        %v902 = vld [vmem:[%s894 + $0x28] sm:$0xf]
        %v903 = vld [vmem:[%s894 + $0x30] sm:$0xf]
        %v904 = vld [vmem:[%s894 + $0x34] sm:$0xf]
        %v905 = vld [vmem:[%s894 + $0x3c] sm:$0xf]
        %v906 = vld [vmem:[%s894 + $0x40] sm:$0xf]
        %v907 = vld [vmem:[%s894 + $0x48] sm:$0xf]
        %v908 = vld [vmem:[%s894 + $0x4c] sm:$0xf]
        %v909 = vld [vmem:[%s894 + $0x54] sm:$0xf]
        %v910 = vld [vmem:[%s894 + $0x58] sm:$0xf]
        %v911 = vld [vmem:[%s894 + $0x60] sm:$0xf]
        %v912 = vld [vmem:[%s894 + $0x64] sm:$0xf]
        %v913 = vld [vmem:[%s894 + $0x6c] sm:$0xf]
        %v914 = vld [vmem:[%s894 + $0x70] sm:$0xf]
        %v915 = vld [vmem:[%s894 + $0x78] sm:$0xf]
        %v916 = vld [vmem:[%s894 + $0x7c] sm:$0xf]
        %v917 = vld [vmem:[%s894 + $0x84] sm:$0xf]
        %v918 = vld [vmem:[%s894 + $0x88] sm:$0xf]
        %v919 = vld [vmem:[%s894 + $0x90] sm:$0xf]
        %v920 = vld [vmem:[%s894 + $0x94] sm:$0xf]
        %v921 = vld [vmem:[%s894 + $0x9c] sm:$0xf]
        %v922 = vld [vmem:[%s894 + $0xa0] sm:$0xf]
        %v923 = vld [vmem:[%s894 + $0xa8] sm:$0xf]
        %v924 = vld [vmem:[%s894 + $0xac] sm:$0xf]
        %v925 = vld [vmem:[%s894 + $0xb4] sm:$0xf]
        %v926 = vld [vmem:[%s894 + $0xb8] sm:$0xf]
        %v927 = vld [vmem:[%s894 + $0x8] sm:$0x1]
        %v928 = vld [vmem:[%s894 + $0x14] sm:$0x1]
        %v929 = vld [vmem:[%s894 + $0x20] sm:$0x1]
        %v930 = vld [vmem:[%s894 + $0x2c] sm:$0x1]
        %v931 = vld [vmem:[%s894 + $0x38] sm:$0x1]
        %v932 = vld [vmem:[%s894 + $0x44] sm:$0x1]
        %v933 = vld [vmem:[%s894 + $0x50] sm:$0x1]
        %v934 = vld [vmem:[%s894 + $0x5c] sm:$0x1]
        %v935 = vld [vmem:[%s894 + $0x68] sm:$0x1]
        %v936 = vld [vmem:[%s894 + $0x74] sm:$0x1]
        %v937 = vld [vmem:[%s894 + $0x80] sm:$0x1]
        %v938 = vld [vmem:[%s894 + $0x8c] sm:$0x1]
        %v939 = vld [vmem:[%s894 + $0x98] sm:$0x1]
        %v940 = vld [vmem:[%s894 + $0xa4] sm:$0x1]
        %v941 = vld [vmem:[%s894 + $0xb0] sm:$0x1]
        %v942 = vld [vmem:[%s894 + $0xbc] sm:$0x1]
        %v943 = vld [vmem:[%s894] sm:$0xe]
        %v944 = vld [vmem:[%s894 + $0xc] sm:$0xe]
        %v945 = vld [vmem:[%s894 + $0x18] sm:$0xe]
        %v946 = vld [vmem:[%s894 + $0x24] sm:$0xe]
        %v947 = vld [vmem:[%s894 + $0x30] sm:$0xe]
        %v948 = vld [vmem:[%s894 + $0x3c] sm:$0xe]
        %v949 = vld [vmem:[%s894 + $0x48] sm:$0xe]
        %v950 = vld [vmem:[%s894 + $0x54] sm:$0xe]
        %v951 = vld [vmem:[%s894 + $0x60] sm:$0xe]
        %v952 = vld [vmem:[%s894 + $0x6c] sm:$0xe]
        %v953 = vld [vmem:[%s894 + $0x78] sm:$0xe]
        %v954 = vld [vmem:[%s894 + $0x84] sm:$0xe]
        %v955 = vld [vmem:[%s894 + $0x90] sm:$0xe]
        %v956 = vld [vmem:[%s894 + $0x9c] sm:$0xe]
        %v957 = vld [vmem:[%s894 + $0xa8] sm:$0xe]
        %v958 = vld [vmem:[%s894 + $0xb4] sm:$0xe]
        %v991 = vunpack.c.l.b16 %v766
        %v992 = vunpack.c.l.b16 %v767
        %v993 = vunpack.c.l.b16 %v768
        %v994 = vunpack.c.l.b16 %v769
        %v995 = vunpack.c.l.b16 %v770
        %v996 = vunpack.c.l.b16 %v771
        %v997 = vunpack.c.l.b16 %v772
        %v998 = vunpack.c.l.b16 %v773
        %v999 = vunpack.c.l.b16 %v774
        %v1000 = vunpack.c.l.b16 %v775
        %v1001 = vunpack.c.l.b16 %v776
        %v1002 = vunpack.c.l.b16 %v777
        %v1003 = vunpack.c.l.b16 %v778
        %v1004 = vunpack.c.l.b16 %v779
        %v1005 = vunpack.c.l.b16 %v780
        %v1006 = vunpack.c.l.b16 %v781
        %v1007 = vunpack.c.l.b16 %v782
        %v1008 = vunpack.c.l.b16 %v783
        %v1009 = vunpack.c.l.b16 %v784
        %v1010 = vunpack.c.l.b16 %v785
        %v1011 = vunpack.c.l.b16 %v786
        %v1012 = vunpack.c.l.b16 %v787
        %v1013 = vunpack.c.l.b16 %v788
        %v1014 = vunpack.c.l.b16 %v789
        %v1015 = vunpack.c.l.b16 %v790
        %v1016 = vunpack.c.l.b16 %v791
        %v1017 = vunpack.c.l.b16 %v792
        %v1018 = vunpack.c.l.b16 %v793
        %v1019 = vunpack.c.l.b16 %v794
        %v1020 = vunpack.c.l.b16 %v795
        %v1021 = vunpack.c.l.b16 %v796
        %v1022 = vunpack.c.l.b16 %v797
        %v1023 = vpack.c.b16 %v992, %v991
        %v1024 = vpack.c.b16 %v994, %v993
        %v1025 = vpack.c.b16 %v996, %v995
        %v1026 = vpack.c.b16 %v998, %v997
        %v1027 = vpack.c.b16 %v1000, %v999
        %v1028 = vpack.c.b16 %v1002, %v1001
        %v1029 = vpack.c.b16 %v1004, %v1003
        %v1030 = vpack.c.b16 %v1006, %v1005
        %v1031 = vpack.c.b16 %v1008, %v1007
        %v1032 = vpack.c.b16 %v1010, %v1009
        %v1033 = vpack.c.b16 %v1012, %v1011
        %v1034 = vpack.c.b16 %v1014, %v1013
        %v1035 = vpack.c.b16 %v1016, %v1015
        %v1036 = vpack.c.b16 %v1018, %v1017
        %v1037 = vpack.c.b16 %v1020, %v1019
        %v1038 = vpack.c.b16 %v1022, %v1021
        %v1055 = vunpack.c.l.b16 %v798
        %v1056 = vunpack.c.l.b16 %v799
        %v1057 = vunpack.c.l.b16 %v800
        %v1058 = vunpack.c.l.b16 %v801
        %v1059 = vunpack.c.l.b16 %v802
        %v1060 = vunpack.c.l.b16 %v803
        %v1061 = vunpack.c.l.b16 %v804
        %v1062 = vunpack.c.l.b16 %v805
        %v1063 = vunpack.c.l.b16 %v806
        %v1064 = vunpack.c.l.b16 %v807
        %v1065 = vunpack.c.l.b16 %v808
        %v1066 = vunpack.c.l.b16 %v809
        %v1067 = vunpack.c.l.b16 %v810
        %v1068 = vunpack.c.l.b16 %v811
        %v1069 = vunpack.c.l.b16 %v812
        %v1070 = vunpack.c.l.b16 %v813
        %v1071 = vpack.c.b16 %v1055, %v1055
        %v1072 = vpack.c.b16 %v1056, %v1056
        %v1073 = vpack.c.b16 %v1057, %v1057
        %v1074 = vpack.c.b16 %v1058, %v1058
        %v1075 = vpack.c.b16 %v1059, %v1059
        %v1076 = vpack.c.b16 %v1060, %v1060
        %v1077 = vpack.c.b16 %v1061, %v1061
        %v1078 = vpack.c.b16 %v1062, %v1062
        %v1079 = vpack.c.b16 %v1063, %v1063
        %v1080 = vpack.c.b16 %v1064, %v1064
        %v1081 = vpack.c.b16 %v1065, %v1065
        %v1082 = vpack.c.b16 %v1066, %v1066
        %v1083 = vpack.c.b16 %v1067, %v1067
        %v1084 = vpack.c.b16 %v1068, %v1068
        %v1085 = vpack.c.b16 %v1069, %v1069
        %v1086 = vpack.c.b16 %v1070, %v1070
        %vm1087 = vsmask.f32 7424
        %v1089 = vshrl.u32 %v1023, 16
        %v1091 = vshll.u32 %v1023, 16
        %v1093 = vrot.slane %v1091, 1
        %v1094 = vor.u32 %v1089, %v1093
        %v1096 = vshll.u32 %v1071, 16
        %v1098 = vrot.slane %v1096, 1
        %v1099 = vsel %vm1087, %v1094, %v1098
        %v1101 = vshrl.u32 %v1024, 16
        %v1103 = vshll.u32 %v1024, 16
        %v1105 = vrot.slane %v1103, 1
        %v1106 = vor.u32 %v1101, %v1105
        %v1108 = vshll.u32 %v1072, 16
        %v1110 = vrot.slane %v1108, 1
        %v1111 = vsel %vm1087, %v1106, %v1110
        %v1113 = vshrl.u32 %v1025, 16
        %v1115 = vshll.u32 %v1025, 16
        %v1117 = vrot.slane %v1115, 1
        %v1118 = vor.u32 %v1113, %v1117
        %v1120 = vshll.u32 %v1073, 16
        %v1122 = vrot.slane %v1120, 1
        %v1123 = vsel %vm1087, %v1118, %v1122
        %v1125 = vshrl.u32 %v1026, 16
        %v1127 = vshll.u32 %v1026, 16
        %v1129 = vrot.slane %v1127, 1
        %v1130 = vor.u32 %v1125, %v1129
        %v1132 = vshll.u32 %v1074, 16
        %v1134 = vrot.slane %v1132, 1
        %v1135 = vsel %vm1087, %v1130, %v1134
        %v1137 = vshrl.u32 %v1027, 16
        %v1139 = vshll.u32 %v1027, 16
        %v1141 = vrot.slane %v1139, 1
        %v1142 = vor.u32 %v1137, %v1141
        %v1144 = vshll.u32 %v1075, 16
        %v1146 = vrot.slane %v1144, 1
        %v1147 = vsel %vm1087, %v1142, %v1146
        %v1149 = vshrl.u32 %v1028, 16
        %v1151 = vshll.u32 %v1028, 16
        %v1153 = vrot.slane %v1151, 1
        %v1154 = vor.u32 %v1149, %v1153
        %v1156 = vshll.u32 %v1076, 16
        %v1158 = vrot.slane %v1156, 1
        %v1159 = vsel %vm1087, %v1154, %v1158
        %v1161 = vshrl.u32 %v1029, 16
        %v1163 = vshll.u32 %v1029, 16
        %v1165 = vrot.slane %v1163, 1
        %v1166 = vor.u32 %v1161, %v1165
        %v1168 = vshll.u32 %v1077, 16
        %v1170 = vrot.slane %v1168, 1
        %v1171 = vsel %vm1087, %v1166, %v1170
        %v1173 = vshrl.u32 %v1030, 16
        %v1175 = vshll.u32 %v1030, 16
        %v1177 = vrot.slane %v1175, 1
        %v1178 = vor.u32 %v1173, %v1177
        %v1180 = vshll.u32 %v1078, 16
        %v1182 = vrot.slane %v1180, 1
        %v1183 = vsel %vm1087, %v1178, %v1182
        %v1185 = vshrl.u32 %v1031, 16
        %v1187 = vshll.u32 %v1031, 16
        %v1189 = vrot.slane %v1187, 1
        %v1190 = vor.u32 %v1185, %v1189
        %v1192 = vshll.u32 %v1079, 16
        %v1194 = vrot.slane %v1192, 1
        %v1195 = vsel %vm1087, %v1190, %v1194
        %v1197 = vshrl.u32 %v1032, 16
        %v1199 = vshll.u32 %v1032, 16
        %v1201 = vrot.slane %v1199, 1
        %v1202 = vor.u32 %v1197, %v1201
        %v1204 = vshll.u32 %v1080, 16
        %v1206 = vrot.slane %v1204, 1
        %v1207 = vsel %vm1087, %v1202, %v1206
        %v1209 = vshrl.u32 %v1033, 16
        %v1211 = vshll.u32 %v1033, 16
        %v1213 = vrot.slane %v1211, 1
        %v1214 = vor.u32 %v1209, %v1213
        %v1216 = vshll.u32 %v1081, 16
        %v1218 = vrot.slane %v1216, 1
        %v1219 = vsel %vm1087, %v1214, %v1218
        %v1221 = vshrl.u32 %v1034, 16
        %v1223 = vshll.u32 %v1034, 16
        %v1225 = vrot.slane %v1223, 1
        %v1226 = vor.u32 %v1221, %v1225
        %v1228 = vshll.u32 %v1082, 16
        %v1230 = vrot.slane %v1228, 1
        %v1231 = vsel %vm1087, %v1226, %v1230
        %v1233 = vshrl.u32 %v1035, 16
        %v1235 = vshll.u32 %v1035, 16
        %v1237 = vrot.slane %v1235, 1
        %v1238 = vor.u32 %v1233, %v1237
        %v1240 = vshll.u32 %v1083, 16
        %v1242 = vrot.slane %v1240, 1
        %v1243 = vsel %vm1087, %v1238, %v1242
        %v1245 = vshrl.u32 %v1036, 16
        %v1247 = vshll.u32 %v1036, 16
        %v1249 = vrot.slane %v1247, 1
        %v1250 = vor.u32 %v1245, %v1249
        %v1252 = vshll.u32 %v1084, 16
        %v1254 = vrot.slane %v1252, 1
        %v1255 = vsel %vm1087, %v1250, %v1254
        %v1257 = vshrl.u32 %v1037, 16
        %v1259 = vshll.u32 %v1037, 16
        %v1261 = vrot.slane %v1259, 1
        %v1262 = vor.u32 %v1257, %v1261
        %v1264 = vshll.u32 %v1085, 16
        %v1266 = vrot.slane %v1264, 1
        %v1267 = vsel %vm1087, %v1262, %v1266
        %v1269 = vshrl.u32 %v1038, 16
        %v1271 = vshll.u32 %v1038, 16
        %v1273 = vrot.slane %v1271, 1
        %v1274 = vor.u32 %v1269, %v1273
        %v1276 = vshll.u32 %v1086, 16
        %v1278 = vrot.slane %v1276, 1
        %v1279 = vsel %vm1087, %v1274, %v1278
        %1280 = vrot.lane.b32.xlu0 %v1099, 4
        %v1281 = vpop.permute.xlu0 %1280
        %1282 = vrot.lane.b32.xlu0 %v1111, 4
        %v1283 = vpop.permute.xlu0 %1282
        %1284 = vrot.lane.b32.xlu0 %v1123, 4
        %v1285 = vpop.permute.xlu0 %1284
        %1286 = vrot.lane.b32.xlu0 %v1135, 4
        %v1287 = vpop.permute.xlu0 %1286
        %1288 = vrot.lane.b32.xlu0 %v1147, 4
        %v1289 = vpop.permute.xlu0 %1288
        %1290 = vrot.lane.b32.xlu0 %v1159, 4
        %v1291 = vpop.permute.xlu0 %1290
        %1292 = vrot.lane.b32.xlu0 %v1171, 4
        %v1293 = vpop.permute.xlu0 %1292
        %1294 = vrot.lane.b32.xlu0 %v1183, 4
        %v1295 = vpop.permute.xlu0 %1294
        %1296 = vrot.lane.b32.xlu0 %v1195, 4
        %v1297 = vpop.permute.xlu0 %1296
        %1298 = vrot.lane.b32.xlu0 %v1207, 4
        %v1299 = vpop.permute.xlu0 %1298
        %1300 = vrot.lane.b32.xlu0 %v1219, 4
        %v1301 = vpop.permute.xlu0 %1300
        %1302 = vrot.lane.b32.xlu0 %v1231, 4
        %v1303 = vpop.permute.xlu0 %1302
        %1304 = vrot.lane.b32.xlu0 %v1243, 4
        %v1305 = vpop.permute.xlu0 %1304
        %1306 = vrot.lane.b32.xlu0 %v1255, 4
        %v1307 = vpop.permute.xlu0 %1306
        %1308 = vrot.lane.b32.xlu0 %v1267, 4
        %v1309 = vpop.permute.xlu0 %1308
        %1310 = vrot.lane.b32.xlu0 %v1279, 4
        %v1311 = vpop.permute.xlu0 %1310
        %v1328 = vunpack.c.l.b16 %v814
        %v1329 = vunpack.c.l.b16 %v815
        %v1330 = vunpack.c.l.b16 %v816
        %v1331 = vunpack.c.l.b16 %v817
        %v1332 = vunpack.c.l.b16 %v818
        %v1333 = vunpack.c.l.b16 %v819
        %v1334 = vunpack.c.l.b16 %v820
        %v1335 = vunpack.c.l.b16 %v821
        %v1336 = vunpack.c.l.b16 %v822
        %v1337 = vunpack.c.l.b16 %v823
        %v1338 = vunpack.c.l.b16 %v824
        %v1339 = vunpack.c.l.b16 %v825
        %v1340 = vunpack.c.l.b16 %v826
        %v1341 = vunpack.c.l.b16 %v827
        %v1342 = vunpack.c.l.b16 %v828
        %v1343 = vunpack.c.l.b16 %v829
        %v1344 = vpack.c.b16 %v992, %v1328
        %v1345 = vpack.c.b16 %v994, %v1329
        %v1346 = vpack.c.b16 %v996, %v1330
        %v1347 = vpack.c.b16 %v998, %v1331
        %v1348 = vpack.c.b16 %v1000, %v1332
        %v1349 = vpack.c.b16 %v1002, %v1333
        %v1350 = vpack.c.b16 %v1004, %v1334
        %v1351 = vpack.c.b16 %v1006, %v1335
        %v1352 = vpack.c.b16 %v1008, %v1336
        %v1353 = vpack.c.b16 %v1010, %v1337
        %v1354 = vpack.c.b16 %v1012, %v1338
        %v1355 = vpack.c.b16 %v1014, %v1339
        %v1356 = vpack.c.b16 %v1016, %v1340
        %v1357 = vpack.c.b16 %v1018, %v1341
        %v1358 = vpack.c.b16 %v1020, %v1342
        %v1359 = vpack.c.b16 %v1022, %v1343
        %vm1360 = vcmask 1046528
        %v1361 = vrot.slane %v1344, 1
        %v1362 = vrot.slane %v1071, 1
        %v1363 = vsel %vm1360, %v1361, %v1362
        %v1364 = vrot.slane %v1345, 1
        %v1365 = vrot.slane %v1072, 1
        %v1366 = vsel %vm1360, %v1364, %v1365
        %v1367 = vrot.slane %v1346, 1
        %v1368 = vrot.slane %v1073, 1
        %v1369 = vsel %vm1360, %v1367, %v1368
        %v1370 = vrot.slane %v1347, 1
        %v1371 = vrot.slane %v1074, 1
        %v1372 = vsel %vm1360, %v1370, %v1371
        %v1373 = vrot.slane %v1348, 1
        %v1374 = vrot.slane %v1075, 1
        %v1375 = vsel %vm1360, %v1373, %v1374
        %v1376 = vrot.slane %v1349, 1
        %v1377 = vrot.slane %v1076, 1
        %v1378 = vsel %vm1360, %v1376, %v1377
        %v1379 = vrot.slane %v1350, 1
        %v1380 = vrot.slane %v1077, 1
        %v1381 = vsel %vm1360, %v1379, %v1380
        %v1382 = vrot.slane %v1351, 1
        %v1383 = vrot.slane %v1078, 1
        %v1384 = vsel %vm1360, %v1382, %v1383
        %v1385 = vrot.slane %v1352, 1
        %v1386 = vrot.slane %v1079, 1
        %v1387 = vsel %vm1360, %v1385, %v1386
        %v1388 = vrot.slane %v1353, 1
        %v1389 = vrot.slane %v1080, 1
        %v1390 = vsel %vm1360, %v1388, %v1389
        %v1391 = vrot.slane %v1354, 1
        %v1392 = vrot.slane %v1081, 1
        %v1393 = vsel %vm1360, %v1391, %v1392
        %v1394 = vrot.slane %v1355, 1
        %v1395 = vrot.slane %v1082, 1
        %v1396 = vsel %vm1360, %v1394, %v1395
        %v1397 = vrot.slane %v1356, 1
        %v1398 = vrot.slane %v1083, 1
        %v1399 = vsel %vm1360, %v1397, %v1398
        %v1400 = vrot.slane %v1357, 1
        %v1401 = vrot.slane %v1084, 1
        %v1402 = vsel %vm1360, %v1400, %v1401
        %v1403 = vrot.slane %v1358, 1
        %v1404 = vrot.slane %v1085, 1
        %v1405 = vsel %vm1360, %v1403, %v1404
        %v1406 = vrot.slane %v1359, 1
        %v1407 = vrot.slane %v1086, 1
        %v1408 = vsel %vm1360, %v1406, %v1407
        %1409 = vrot.lane.b32.xlu0 %v1363, 8
        %v1410 = vpop.permute.xlu0 %1409
        %1411 = vrot.lane.b32.xlu0 %v1366, 8
        %v1412 = vpop.permute.xlu0 %1411
        %1413 = vrot.lane.b32.xlu0 %v1369, 8
        %v1414 = vpop.permute.xlu0 %1413
        %1415 = vrot.lane.b32.xlu0 %v1372, 8
        %v1416 = vpop.permute.xlu0 %1415
        %1417 = vrot.lane.b32.xlu0 %v1375, 8
        %v1418 = vpop.permute.xlu0 %1417
        %1419 = vrot.lane.b32.xlu0 %v1378, 8
        %v1420 = vpop.permute.xlu0 %1419
        %1421 = vrot.lane.b32.xlu0 %v1381, 8
        %v1422 = vpop.permute.xlu0 %1421
        %1423 = vrot.lane.b32.xlu0 %v1384, 8
        %v1424 = vpop.permute.xlu0 %1423
        %1425 = vrot.lane.b32.xlu0 %v1387, 8
        %v1426 = vpop.permute.xlu0 %1425
        %1427 = vrot.lane.b32.xlu0 %v1390, 8
        %v1428 = vpop.permute.xlu0 %1427
        %1429 = vrot.lane.b32.xlu0 %v1393, 8
        %v1430 = vpop.permute.xlu0 %1429
        %1431 = vrot.lane.b32.xlu0 %v1396, 8
        %v1432 = vpop.permute.xlu0 %1431
        %1433 = vrot.lane.b32.xlu0 %v1399, 8
        %v1434 = vpop.permute.xlu0 %1433
        %1435 = vrot.lane.b32.xlu0 %v1402, 8
        %v1436 = vpop.permute.xlu0 %1435
        %1437 = vrot.lane.b32.xlu0 %v1405, 8
        %v1438 = vpop.permute.xlu0 %1437
        %1439 = vrot.lane.b32.xlu0 %v1408, 8
        %v1440 = vpop.permute.xlu0 %1439
        %v1473 = vunpack.c.l.b16 %v830
        %v1474 = vunpack.c.l.b16 %v831
        %v1475 = vunpack.c.l.b16 %v832
        %v1476 = vunpack.c.l.b16 %v833
        %v1477 = vunpack.c.l.b16 %v834
        %v1478 = vunpack.c.l.b16 %v835
        %v1479 = vunpack.c.l.b16 %v836
        %v1480 = vunpack.c.l.b16 %v837
        %v1481 = vunpack.c.l.b16 %v838
        %v1482 = vunpack.c.l.b16 %v839
        %v1483 = vunpack.c.l.b16 %v840
        %v1484 = vunpack.c.l.b16 %v841
        %v1485 = vunpack.c.l.b16 %v842
        %v1486 = vunpack.c.l.b16 %v843
        %v1487 = vunpack.c.l.b16 %v844
        %v1488 = vunpack.c.l.b16 %v845
        %v1489 = vunpack.c.l.b16 %v846
        %v1490 = vunpack.c.l.b16 %v847
        %v1491 = vunpack.c.l.b16 %v848
        %v1492 = vunpack.c.l.b16 %v849
        %v1493 = vunpack.c.l.b16 %v850
        %v1494 = vunpack.c.l.b16 %v851
        %v1495 = vunpack.c.l.b16 %v852
        %v1496 = vunpack.c.l.b16 %v853
        %v1497 = vunpack.c.l.b16 %v854
        %v1498 = vunpack.c.l.b16 %v855
        %v1499 = vunpack.c.l.b16 %v856
        %v1500 = vunpack.c.l.b16 %v857
        %v1501 = vunpack.c.l.b16 %v858
        %v1502 = vunpack.c.l.b16 %v859
        %v1503 = vunpack.c.l.b16 %v860
        %v1504 = vunpack.c.l.b16 %v861
        %v1505 = vpack.c.b16 %v1474, %v1473
        %v1506 = vpack.c.b16 %v1476, %v1475
        %v1507 = vpack.c.b16 %v1478, %v1477
        %v1508 = vpack.c.b16 %v1480, %v1479
        %v1509 = vpack.c.b16 %v1482, %v1481
        %v1510 = vpack.c.b16 %v1484, %v1483
        %v1511 = vpack.c.b16 %v1486, %v1485
        %v1512 = vpack.c.b16 %v1488, %v1487
        %v1513 = vpack.c.b16 %v1490, %v1489
        %v1514 = vpack.c.b16 %v1492, %v1491
        %v1515 = vpack.c.b16 %v1494, %v1493
        %v1516 = vpack.c.b16 %v1496, %v1495
        %v1517 = vpack.c.b16 %v1498, %v1497
        %v1518 = vpack.c.b16 %v1500, %v1499
        %v1519 = vpack.c.b16 %v1502, %v1501
        %v1520 = vpack.c.b16 %v1504, %v1503
        %1521 = vrot.lane.b32.xlu0 %v1505, 12
        %v1522 = vpop.permute.xlu0 %1521
        %1523 = vrot.lane.b32.xlu0 %v1506, 12
        %v1524 = vpop.permute.xlu0 %1523
        %1525 = vrot.lane.b32.xlu0 %v1507, 12
        %v1526 = vpop.permute.xlu0 %1525
        %1527 = vrot.lane.b32.xlu0 %v1508, 12
        %v1528 = vpop.permute.xlu0 %1527
        %1529 = vrot.lane.b32.xlu0 %v1509, 12
        %v1530 = vpop.permute.xlu0 %1529
        %1531 = vrot.lane.b32.xlu0 %v1510, 12
        %v1532 = vpop.permute.xlu0 %1531
        %1533 = vrot.lane.b32.xlu0 %v1511, 12
        %v1534 = vpop.permute.xlu0 %1533
        %1535 = vrot.lane.b32.xlu0 %v1512, 12
        %v1536 = vpop.permute.xlu0 %1535
        %1537 = vrot.lane.b32.xlu0 %v1513, 12
        %v1538 = vpop.permute.xlu0 %1537
        %1539 = vrot.lane.b32.xlu0 %v1514, 12
        %v1540 = vpop.permute.xlu0 %1539
        %1541 = vrot.lane.b32.xlu0 %v1515, 12
        %v1542 = vpop.permute.xlu0 %1541
        %1543 = vrot.lane.b32.xlu0 %v1516, 12
        %v1544 = vpop.permute.xlu0 %1543
        %1545 = vrot.lane.b32.xlu0 %v1517, 12
        %v1546 = vpop.permute.xlu0 %1545
        %1547 = vrot.lane.b32.xlu0 %v1518, 12
        %v1548 = vpop.permute.xlu0 %1547
        %1549 = vrot.lane.b32.xlu0 %v1519, 12
        %v1550 = vpop.permute.xlu0 %1549
        %1551 = vrot.lane.b32.xlu0 %v1520, 12
        %v1552 = vpop.permute.xlu0 %1551
        %v1569 = vunpack.c.l.b16 %v862
        %v1570 = vunpack.c.l.b16 %v863
        %v1571 = vunpack.c.l.b16 %v864
        %v1572 = vunpack.c.l.b16 %v865
        %v1573 = vunpack.c.l.b16 %v866
        %v1574 = vunpack.c.l.b16 %v867
        %v1575 = vunpack.c.l.b16 %v868
        %v1576 = vunpack.c.l.b16 %v869
        %v1577 = vunpack.c.l.b16 %v870
        %v1578 = vunpack.c.l.b16 %v871
        %v1579 = vunpack.c.l.b16 %v872
        %v1580 = vunpack.c.l.b16 %v873
        %v1581 = vunpack.c.l.b16 %v874
        %v1582 = vunpack.c.l.b16 %v875
        %v1583 = vunpack.c.l.b16 %v876
        %v1584 = vunpack.c.l.b16 %v877
        %v1585 = vpack.c.b16 %v1569, %v1569
        %v1586 = vpack.c.b16 %v1570, %v1570
        %v1587 = vpack.c.b16 %v1571, %v1571
        %v1588 = vpack.c.b16 %v1572, %v1572
        %v1589 = vpack.c.b16 %v1573, %v1573
        %v1590 = vpack.c.b16 %v1574, %v1574
        %v1591 = vpack.c.b16 %v1575, %v1575
        %v1592 = vpack.c.b16 %v1576, %v1576
        %v1593 = vpack.c.b16 %v1577, %v1577
        %v1594 = vpack.c.b16 %v1578, %v1578
        %v1595 = vpack.c.b16 %v1579, %v1579
        %v1596 = vpack.c.b16 %v1580, %v1580
        %v1597 = vpack.c.b16 %v1581, %v1581
        %v1598 = vpack.c.b16 %v1582, %v1582
        %v1599 = vpack.c.b16 %v1583, %v1583
        %v1600 = vpack.c.b16 %v1584, %v1584
        %v1602 = vshrl.u32 %v1505, 16
        %v1604 = vshll.u32 %v1505, 16
        %v1606 = vrot.slane %v1604, 1
        %v1607 = vor.u32 %v1602, %v1606
        %v1609 = vshll.u32 %v1585, 16
        %v1611 = vrot.slane %v1609, 1
        %v1612 = vsel %vm1087, %v1607, %v1611
        %v1614 = vshrl.u32 %v1506, 16
        %v1616 = vshll.u32 %v1506, 16
        %v1618 = vrot.slane %v1616, 1
        %v1619 = vor.u32 %v1614, %v1618
        %v1621 = vshll.u32 %v1586, 16
        %v1623 = vrot.slane %v1621, 1
        %v1624 = vsel %vm1087, %v1619, %v1623
        %v1626 = vshrl.u32 %v1507, 16
        %v1628 = vshll.u32 %v1507, 16
        %v1630 = vrot.slane %v1628, 1
        %v1631 = vor.u32 %v1626, %v1630
        %v1633 = vshll.u32 %v1587, 16
        %v1635 = vrot.slane %v1633, 1
        %v1636 = vsel %vm1087, %v1631, %v1635
        %v1638 = vshrl.u32 %v1508, 16
        %v1640 = vshll.u32 %v1508, 16
        %v1642 = vrot.slane %v1640, 1
        %v1643 = vor.u32 %v1638, %v1642
        %v1645 = vshll.u32 %v1588, 16
        %v1647 = vrot.slane %v1645, 1
        %v1648 = vsel %vm1087, %v1643, %v1647
        %v1650 = vshrl.u32 %v1509, 16
        %v1652 = vshll.u32 %v1509, 16
        %v1654 = vrot.slane %v1652, 1
        %v1655 = vor.u32 %v1650, %v1654
        %v1657 = vshll.u32 %v1589, 16
        %v1659 = vrot.slane %v1657, 1
        %v1660 = vsel %vm1087, %v1655, %v1659
        %v1662 = vshrl.u32 %v1510, 16
        %v1664 = vshll.u32 %v1510, 16
        %v1666 = vrot.slane %v1664, 1
        %v1667 = vor.u32 %v1662, %v1666
        %v1669 = vshll.u32 %v1590, 16
        %v1671 = vrot.slane %v1669, 1
        %v1672 = vsel %vm1087, %v1667, %v1671
        %v1674 = vshrl.u32 %v1511, 16
        %v1676 = vshll.u32 %v1511, 16
        %v1678 = vrot.slane %v1676, 1
        %v1679 = vor.u32 %v1674, %v1678
        %v1681 = vshll.u32 %v1591, 16
        %v1683 = vrot.slane %v1681, 1
        %v1684 = vsel %vm1087, %v1679, %v1683
        %v1686 = vshrl.u32 %v1512, 16
        %v1688 = vshll.u32 %v1512, 16
        %v1690 = vrot.slane %v1688, 1
        %v1691 = vor.u32 %v1686, %v1690
        %v1693 = vshll.u32 %v1592, 16
        %v1695 = vrot.slane %v1693, 1
        %v1696 = vsel %vm1087, %v1691, %v1695
        %v1698 = vshrl.u32 %v1513, 16
        %v1700 = vshll.u32 %v1513, 16
        %v1702 = vrot.slane %v1700, 1
        %v1703 = vor.u32 %v1698, %v1702
        %v1705 = vshll.u32 %v1593, 16
        %v1707 = vrot.slane %v1705, 1
        %v1708 = vsel %vm1087, %v1703, %v1707
        %v1710 = vshrl.u32 %v1514, 16
        %v1712 = vshll.u32 %v1514, 16
        %v1714 = vrot.slane %v1712, 1
        %v1715 = vor.u32 %v1710, %v1714
        %v1717 = vshll.u32 %v1594, 16
        %v1719 = vrot.slane %v1717, 1
        %v1720 = vsel %vm1087, %v1715, %v1719
        %v1722 = vshrl.u32 %v1515, 16
        %v1724 = vshll.u32 %v1515, 16
        %v1726 = vrot.slane %v1724, 1
        %v1727 = vor.u32 %v1722, %v1726
        %v1729 = vshll.u32 %v1595, 16
        %v1731 = vrot.slane %v1729, 1
        %v1732 = vsel %vm1087, %v1727, %v1731
        %v1734 = vshrl.u32 %v1516, 16
        %v1736 = vshll.u32 %v1516, 16
        %v1738 = vrot.slane %v1736, 1
        %v1739 = vor.u32 %v1734, %v1738
        %v1741 = vshll.u32 %v1596, 16
        %v1743 = vrot.slane %v1741, 1
        %v1744 = vsel %vm1087, %v1739, %v1743
        %v1746 = vshrl.u32 %v1517, 16
        %v1748 = vshll.u32 %v1517, 16
        %v1750 = vrot.slane %v1748, 1
        %v1751 = vor.u32 %v1746, %v1750
        %v1753 = vshll.u32 %v1597, 16
        %v1755 = vrot.slane %v1753, 1
        %v1756 = vsel %vm1087, %v1751, %v1755
        %v1758 = vshrl.u32 %v1518, 16
        %v1760 = vshll.u32 %v1518, 16
        %v1762 = vrot.slane %v1760, 1
        %v1763 = vor.u32 %v1758, %v1762
        %v1765 = vshll.u32 %v1598, 16
        %v1767 = vrot.slane %v1765, 1
        %v1768 = vsel %vm1087, %v1763, %v1767
        %v1770 = vshrl.u32 %v1519, 16
        %v1772 = vshll.u32 %v1519, 16
        %v1774 = vrot.slane %v1772, 1
        %v1775 = vor.u32 %v1770, %v1774
        %v1777 = vshll.u32 %v1599, 16
        %v1779 = vrot.slane %v1777, 1
        %v1780 = vsel %vm1087, %v1775, %v1779
        %v1782 = vshrl.u32 %v1520, 16
        %v1784 = vshll.u32 %v1520, 16
        %v1786 = vrot.slane %v1784, 1
        %v1787 = vor.u32 %v1782, %v1786
        %v1789 = vshll.u32 %v1600, 16
        %v1791 = vrot.slane %v1789, 1
        %v1792 = vsel %vm1087, %v1787, %v1791
        %1793 = vrot.lane.b32.xlu0 %v1612, 16
        %v1794 = vpop.permute.xlu0 %1793
        %1795 = vrot.lane.b32.xlu0 %v1624, 16
        %v1796 = vpop.permute.xlu0 %1795
        %1797 = vrot.lane.b32.xlu0 %v1636, 16
        %v1798 = vpop.permute.xlu0 %1797
        %1799 = vrot.lane.b32.xlu0 %v1648, 16
        %v1800 = vpop.permute.xlu0 %1799
        %1801 = vrot.lane.b32.xlu0 %v1660, 16
        %v1802 = vpop.permute.xlu0 %1801
        %1803 = vrot.lane.b32.xlu0 %v1672, 16
        %v1804 = vpop.permute.xlu0 %1803
        %1805 = vrot.lane.b32.xlu0 %v1684, 16
        %v1806 = vpop.permute.xlu0 %1805
        %1807 = vrot.lane.b32.xlu0 %v1696, 16
        %v1808 = vpop.permute.xlu0 %1807
        %1809 = vrot.lane.b32.xlu0 %v1708, 16
        %v1810 = vpop.permute.xlu0 %1809
        %1811 = vrot.lane.b32.xlu0 %v1720, 16
        %v1812 = vpop.permute.xlu0 %1811
        %1813 = vrot.lane.b32.xlu0 %v1732, 16
        %v1814 = vpop.permute.xlu0 %1813
        %1815 = vrot.lane.b32.xlu0 %v1744, 16
        %v1816 = vpop.permute.xlu0 %1815
        %1817 = vrot.lane.b32.xlu0 %v1756, 16
        %v1818 = vpop.permute.xlu0 %1817
        %1819 = vrot.lane.b32.xlu0 %v1768, 16
        %v1820 = vpop.permute.xlu0 %1819
        %1821 = vrot.lane.b32.xlu0 %v1780, 16
        %v1822 = vpop.permute.xlu0 %1821
        %1823 = vrot.lane.b32.xlu0 %v1792, 16
        %v1824 = vpop.permute.xlu0 %1823
        %v1841 = vunpack.c.l.b16 %v878
        %v1842 = vunpack.c.l.b16 %v879
        %v1843 = vunpack.c.l.b16 %v880
        %v1844 = vunpack.c.l.b16 %v881
        %v1845 = vunpack.c.l.b16 %v882
        %v1846 = vunpack.c.l.b16 %v883
        %v1847 = vunpack.c.l.b16 %v884
        %v1848 = vunpack.c.l.b16 %v885
        %v1849 = vunpack.c.l.b16 %v886
        %v1850 = vunpack.c.l.b16 %v887
        %v1851 = vunpack.c.l.b16 %v888
        %v1852 = vunpack.c.l.b16 %v889
        %v1853 = vunpack.c.l.b16 %v890
        %v1854 = vunpack.c.l.b16 %v891
        %v1855 = vunpack.c.l.b16 %v892
        %v1856 = vunpack.c.l.b16 %v893
        %v1857 = vpack.c.b16 %v1474, %v1841
        %v1858 = vpack.c.b16 %v1476, %v1842
        %v1859 = vpack.c.b16 %v1478, %v1843
        %v1860 = vpack.c.b16 %v1480, %v1844
        %v1861 = vpack.c.b16 %v1482, %v1845
        %v1862 = vpack.c.b16 %v1484, %v1846
        %v1863 = vpack.c.b16 %v1486, %v1847
        %v1864 = vpack.c.b16 %v1488, %v1848
        %v1865 = vpack.c.b16 %v1490, %v1849
        %v1866 = vpack.c.b16 %v1492, %v1850
        %v1867 = vpack.c.b16 %v1494, %v1851
        %v1868 = vpack.c.b16 %v1496, %v1852
        %v1869 = vpack.c.b16 %v1498, %v1853
        %v1870 = vpack.c.b16 %v1500, %v1854
        %v1871 = vpack.c.b16 %v1502, %v1855
        %v1872 = vpack.c.b16 %v1504, %v1856
        %v1873 = vrot.slane %v1857, 1
        %v1874 = vrot.slane %v1585, 1
        %v1875 = vsel %vm1360, %v1873, %v1874
        %v1876 = vrot.slane %v1858, 1
        %v1877 = vrot.slane %v1586, 1
        %v1878 = vsel %vm1360, %v1876, %v1877
        %v1879 = vrot.slane %v1859, 1
        %v1880 = vrot.slane %v1587, 1
        %v1881 = vsel %vm1360, %v1879, %v1880
        %v1882 = vrot.slane %v1860, 1
        %v1883 = vrot.slane %v1588, 1
        %v1884 = vsel %vm1360, %v1882, %v1883
        %v1885 = vrot.slane %v1861, 1
        %v1886 = vrot.slane %v1589, 1
        %v1887 = vsel %vm1360, %v1885, %v1886
        %v1888 = vrot.slane %v1862, 1
        %v1889 = vrot.slane %v1590, 1
        %v1890 = vsel %vm1360, %v1888, %v1889
        %v1891 = vrot.slane %v1863, 1
        %v1892 = vrot.slane %v1591, 1
        %v1893 = vsel %vm1360, %v1891, %v1892
        %v1894 = vrot.slane %v1864, 1
        %v1895 = vrot.slane %v1592, 1
        %v1896 = vsel %vm1360, %v1894, %v1895
        %v1897 = vrot.slane %v1865, 1
        %v1898 = vrot.slane %v1593, 1
        %v1899 = vsel %vm1360, %v1897, %v1898
        %v1900 = vrot.slane %v1866, 1
        %v1901 = vrot.slane %v1594, 1
        %v1902 = vsel %vm1360, %v1900, %v1901
        %v1903 = vrot.slane %v1867, 1
        %v1904 = vrot.slane %v1595, 1
        %v1905 = vsel %vm1360, %v1903, %v1904
        %v1906 = vrot.slane %v1868, 1
        %v1907 = vrot.slane %v1596, 1
        %v1908 = vsel %vm1360, %v1906, %v1907
        %v1909 = vrot.slane %v1869, 1
        %v1910 = vrot.slane %v1597, 1
        %v1911 = vsel %vm1360, %v1909, %v1910
        %v1912 = vrot.slane %v1870, 1
        %v1913 = vrot.slane %v1598, 1
        %v1914 = vsel %vm1360, %v1912, %v1913
        %v1915 = vrot.slane %v1871, 1
        %v1916 = vrot.slane %v1599, 1
        %v1917 = vsel %vm1360, %v1915, %v1916
        %v1918 = vrot.slane %v1872, 1
        %v1919 = vrot.slane %v1600, 1
        %v1920 = vsel %vm1360, %v1918, %v1919
        %1921 = vrot.lane.b32.xlu0 %v1875, 20
        %v1922 = vpop.permute.xlu0 %1921
        %1923 = vrot.lane.b32.xlu0 %v1878, 20
        %v1924 = vpop.permute.xlu0 %1923
        %1925 = vrot.lane.b32.xlu0 %v1881, 20
        %v1926 = vpop.permute.xlu0 %1925
        %1927 = vrot.lane.b32.xlu0 %v1884, 20
        %v1928 = vpop.permute.xlu0 %1927
        %1929 = vrot.lane.b32.xlu0 %v1887, 20
        %v1930 = vpop.permute.xlu0 %1929
        %1931 = vrot.lane.b32.xlu0 %v1890, 20
        %v1932 = vpop.permute.xlu0 %1931
        %1933 = vrot.lane.b32.xlu0 %v1893, 20
        %v1934 = vpop.permute.xlu0 %1933
        %1935 = vrot.lane.b32.xlu0 %v1896, 20
        %v1936 = vpop.permute.xlu0 %1935
        %1937 = vrot.lane.b32.xlu0 %v1899, 20
        %v1938 = vpop.permute.xlu0 %1937
        %1939 = vrot.lane.b32.xlu0 %v1902, 20
        %v1940 = vpop.permute.xlu0 %1939
        %1941 = vrot.lane.b32.xlu0 %v1905, 20
        %v1942 = vpop.permute.xlu0 %1941
        %1943 = vrot.lane.b32.xlu0 %v1908, 20
        %v1944 = vpop.permute.xlu0 %1943
        %1945 = vrot.lane.b32.xlu0 %v1911, 20
        %v1946 = vpop.permute.xlu0 %1945
        %1947 = vrot.lane.b32.xlu0 %v1914, 20
        %v1948 = vpop.permute.xlu0 %1947
        %1949 = vrot.lane.b32.xlu0 %v1917, 20
        %v1950 = vpop.permute.xlu0 %1949
        %1951 = vrot.lane.b32.xlu0 %v1920, 20
        %v1952 = vpop.permute.xlu0 %1951
        %v1985 = vunpack.c.l.b16 %v895
        %v1986 = vunpack.c.l.b16 %v896
        %v1987 = vunpack.c.l.b16 %v897
        %v1988 = vunpack.c.l.b16 %v898
        %v1989 = vunpack.c.l.b16 %v899
        %v1990 = vunpack.c.l.b16 %v900
        %v1991 = vunpack.c.l.b16 %v901
        %v1992 = vunpack.c.l.b16 %v902
        %v1993 = vunpack.c.l.b16 %v903
        %v1994 = vunpack.c.l.b16 %v904
        %v1995 = vunpack.c.l.b16 %v905
        %v1996 = vunpack.c.l.b16 %v906
        %v1997 = vunpack.c.l.b16 %v907
        %v1998 = vunpack.c.l.b16 %v908
        %v1999 = vunpack.c.l.b16 %v909
        %v2000 = vunpack.c.l.b16 %v910
        %v2001 = vunpack.c.l.b16 %v911
        %v2002 = vunpack.c.l.b16 %v912
        %v2003 = vunpack.c.l.b16 %v913
        %v2004 = vunpack.c.l.b16 %v914
        %v2005 = vunpack.c.l.b16 %v915
        %v2006 = vunpack.c.l.b16 %v916
        %v2007 = vunpack.c.l.b16 %v917
        %v2008 = vunpack.c.l.b16 %v918
        %v2009 = vunpack.c.l.b16 %v919
        %v2010 = vunpack.c.l.b16 %v920
        %v2011 = vunpack.c.l.b16 %v921
        %v2012 = vunpack.c.l.b16 %v922
        %v2013 = vunpack.c.l.b16 %v923
        %v2014 = vunpack.c.l.b16 %v924
        %v2015 = vunpack.c.l.b16 %v925
        %v2016 = vunpack.c.l.b16 %v926
        %v2017 = vpack.c.b16 %v1986, %v1985
        %v2018 = vpack.c.b16 %v1988, %v1987
        %v2019 = vpack.c.b16 %v1990, %v1989
        %v2020 = vpack.c.b16 %v1992, %v1991
        %v2021 = vpack.c.b16 %v1994, %v1993
        %v2022 = vpack.c.b16 %v1996, %v1995
        %v2023 = vpack.c.b16 %v1998, %v1997
        %v2024 = vpack.c.b16 %v2000, %v1999
        %v2025 = vpack.c.b16 %v2002, %v2001
        %v2026 = vpack.c.b16 %v2004, %v2003
        %v2027 = vpack.c.b16 %v2006, %v2005
        %v2028 = vpack.c.b16 %v2008, %v2007
        %v2029 = vpack.c.b16 %v2010, %v2009
        %v2030 = vpack.c.b16 %v2012, %v2011
        %v2031 = vpack.c.b16 %v2014, %v2013
        %v2032 = vpack.c.b16 %v2016, %v2015
        %2033 = vrot.lane.b32.xlu0 %v2017, 24
        %v2034 = vpop.permute.xlu0 %2033
        %2035 = vrot.lane.b32.xlu0 %v2018, 24
        %v2036 = vpop.permute.xlu0 %2035
        %2037 = vrot.lane.b32.xlu0 %v2019, 24
        %v2038 = vpop.permute.xlu0 %2037
        %2039 = vrot.lane.b32.xlu0 %v2020, 24
        %v2040 = vpop.permute.xlu0 %2039
        %2041 = vrot.lane.b32.xlu0 %v2021, 24
        %v2042 = vpop.permute.xlu0 %2041
        %2043 = vrot.lane.b32.xlu0 %v2022, 24
        %v2044 = vpop.permute.xlu0 %2043
        %2045 = vrot.lane.b32.xlu0 %v2023, 24
        %v2046 = vpop.permute.xlu0 %2045
        %2047 = vrot.lane.b32.xlu0 %v2024, 24
        %v2048 = vpop.permute.xlu0 %2047
        %2049 = vrot.lane.b32.xlu0 %v2025, 24
        %v2050 = vpop.permute.xlu0 %2049
        %2051 = vrot.lane.b32.xlu0 %v2026, 24
        %v2052 = vpop.permute.xlu0 %2051
        %2053 = vrot.lane.b32.xlu0 %v2027, 24
        %v2054 = vpop.permute.xlu0 %2053
        %2055 = vrot.lane.b32.xlu0 %v2028, 24
        %v2056 = vpop.permute.xlu0 %2055
        %2057 = vrot.lane.b32.xlu0 %v2029, 24
        %v2058 = vpop.permute.xlu0 %2057
        %2059 = vrot.lane.b32.xlu0 %v2030, 24
        %v2060 = vpop.permute.xlu0 %2059
        %2061 = vrot.lane.b32.xlu0 %v2031, 24
        %v2062 = vpop.permute.xlu0 %2061
        %2063 = vrot.lane.b32.xlu0 %v2032, 24
        %v2064 = vpop.permute.xlu0 %2063
        %v2081 = vunpack.c.l.b16 %v927
        %v2082 = vunpack.c.l.b16 %v928
        %v2083 = vunpack.c.l.b16 %v929
        %v2084 = vunpack.c.l.b16 %v930
        %v2085 = vunpack.c.l.b16 %v931
        %v2086 = vunpack.c.l.b16 %v932
        %v2087 = vunpack.c.l.b16 %v933
        %v2088 = vunpack.c.l.b16 %v934
        %v2089 = vunpack.c.l.b16 %v935
        %v2090 = vunpack.c.l.b16 %v936
        %v2091 = vunpack.c.l.b16 %v937
        %v2092 = vunpack.c.l.b16 %v938
        %v2093 = vunpack.c.l.b16 %v939
        %v2094 = vunpack.c.l.b16 %v940
        %v2095 = vunpack.c.l.b16 %v941
        %v2096 = vunpack.c.l.b16 %v942
        %v2097 = vpack.c.b16 %v2081, %v2081
        %v2098 = vpack.c.b16 %v2082, %v2082
        %v2099 = vpack.c.b16 %v2083, %v2083
        %v2100 = vpack.c.b16 %v2084, %v2084
        %v2101 = vpack.c.b16 %v2085, %v2085
        %v2102 = vpack.c.b16 %v2086, %v2086
        %v2103 = vpack.c.b16 %v2087, %v2087
        %v2104 = vpack.c.b16 %v2088, %v2088
        %v2105 = vpack.c.b16 %v2089, %v2089
        %v2106 = vpack.c.b16 %v2090, %v2090
        %v2107 = vpack.c.b16 %v2091, %v2091
        %v2108 = vpack.c.b16 %v2092, %v2092
        %v2109 = vpack.c.b16 %v2093, %v2093
        %v2110 = vpack.c.b16 %v2094, %v2094
        %v2111 = vpack.c.b16 %v2095, %v2095
        %v2112 = vpack.c.b16 %v2096, %v2096
        %v2114 = vshrl.u32 %v2017, 16
        %v2116 = vshll.u32 %v2017, 16
        %v2118 = vrot.slane %v2116, 1
        %v2119 = vor.u32 %v2114, %v2118
        %v2121 = vshll.u32 %v2097, 16
        %v2123 = vrot.slane %v2121, 1
        %v2124 = vsel %vm1087, %v2119, %v2123
        %v2126 = vshrl.u32 %v2018, 16
        %v2128 = vshll.u32 %v2018, 16
        %v2130 = vrot.slane %v2128, 1
        %v2131 = vor.u32 %v2126, %v2130
        %v2133 = vshll.u32 %v2098, 16
        %v2135 = vrot.slane %v2133, 1
        %v2136 = vsel %vm1087, %v2131, %v2135
        %v2138 = vshrl.u32 %v2019, 16
        %v2140 = vshll.u32 %v2019, 16
        %v2142 = vrot.slane %v2140, 1
        %v2143 = vor.u32 %v2138, %v2142
        %v2145 = vshll.u32 %v2099, 16
        %v2147 = vrot.slane %v2145, 1
        %v2148 = vsel %vm1087, %v2143, %v2147
        %v2150 = vshrl.u32 %v2020, 16
        %v2152 = vshll.u32 %v2020, 16
        %v2154 = vrot.slane %v2152, 1
        %v2155 = vor.u32 %v2150, %v2154
        %v2157 = vshll.u32 %v2100, 16
        %v2159 = vrot.slane %v2157, 1
        %v2160 = vsel %vm1087, %v2155, %v2159
        %v2162 = vshrl.u32 %v2021, 16
        %v2164 = vshll.u32 %v2021, 16
        %v2166 = vrot.slane %v2164, 1
        %v2167 = vor.u32 %v2162, %v2166
        %v2169 = vshll.u32 %v2101, 16
        %v2171 = vrot.slane %v2169, 1
        %v2172 = vsel %vm1087, %v2167, %v2171
        %v2174 = vshrl.u32 %v2022, 16
        %v2176 = vshll.u32 %v2022, 16
        %v2178 = vrot.slane %v2176, 1
        %v2179 = vor.u32 %v2174, %v2178
        %v2181 = vshll.u32 %v2102, 16
        %v2183 = vrot.slane %v2181, 1
        %v2184 = vsel %vm1087, %v2179, %v2183
        %v2186 = vshrl.u32 %v2023, 16
        %v2188 = vshll.u32 %v2023, 16
        %v2190 = vrot.slane %v2188, 1
        %v2191 = vor.u32 %v2186, %v2190
        %v2193 = vshll.u32 %v2103, 16
        %v2195 = vrot.slane %v2193, 1
        %v2196 = vsel %vm1087, %v2191, %v2195
        %v2198 = vshrl.u32 %v2024, 16
        %v2200 = vshll.u32 %v2024, 16
        %v2202 = vrot.slane %v2200, 1
        %v2203 = vor.u32 %v2198, %v2202
        %v2205 = vshll.u32 %v2104, 16
        %v2207 = vrot.slane %v2205, 1
        %v2208 = vsel %vm1087, %v2203, %v2207
        %v2210 = vshrl.u32 %v2025, 16
        %v2212 = vshll.u32 %v2025, 16
        %v2214 = vrot.slane %v2212, 1
        %v2215 = vor.u32 %v2210, %v2214
        %v2217 = vshll.u32 %v2105, 16
        %v2219 = vrot.slane %v2217, 1
        %v2220 = vsel %vm1087, %v2215, %v2219
        %v2222 = vshrl.u32 %v2026, 16
        %v2224 = vshll.u32 %v2026, 16
        %v2226 = vrot.slane %v2224, 1
        %v2227 = vor.u32 %v2222, %v2226
        %v2229 = vshll.u32 %v2106, 16
        %v2231 = vrot.slane %v2229, 1
        %v2232 = vsel %vm1087, %v2227, %v2231
        %v2234 = vshrl.u32 %v2027, 16
        %v2236 = vshll.u32 %v2027, 16
        %v2238 = vrot.slane %v2236, 1
        %v2239 = vor.u32 %v2234, %v2238
        %v2241 = vshll.u32 %v2107, 16
        %v2243 = vrot.slane %v2241, 1
        %v2244 = vsel %vm1087, %v2239, %v2243
        %v2246 = vshrl.u32 %v2028, 16
        %v2248 = vshll.u32 %v2028, 16
        %v2250 = vrot.slane %v2248, 1
        %v2251 = vor.u32 %v2246, %v2250
        %v2253 = vshll.u32 %v2108, 16
        %v2255 = vrot.slane %v2253, 1
        %v2256 = vsel %vm1087, %v2251, %v2255
        %v2258 = vshrl.u32 %v2029, 16
        %v2260 = vshll.u32 %v2029, 16
        %v2262 = vrot.slane %v2260, 1
        %v2263 = vor.u32 %v2258, %v2262
        %v2265 = vshll.u32 %v2109, 16
        %v2267 = vrot.slane %v2265, 1
        %v2268 = vsel %vm1087, %v2263, %v2267
        %v2270 = vshrl.u32 %v2030, 16
        %v2272 = vshll.u32 %v2030, 16
        %v2274 = vrot.slane %v2272, 1
        %v2275 = vor.u32 %v2270, %v2274
        %v2277 = vshll.u32 %v2110, 16
        %v2279 = vrot.slane %v2277, 1
        %v2280 = vsel %vm1087, %v2275, %v2279
        %v2282 = vshrl.u32 %v2031, 16
        %v2284 = vshll.u32 %v2031, 16
        %v2286 = vrot.slane %v2284, 1
        %v2287 = vor.u32 %v2282, %v2286
        %v2289 = vshll.u32 %v2111, 16
        %v2291 = vrot.slane %v2289, 1
        %v2292 = vsel %vm1087, %v2287, %v2291
        %v2294 = vshrl.u32 %v2032, 16
        %v2296 = vshll.u32 %v2032, 16
        %v2298 = vrot.slane %v2296, 1
        %v2299 = vor.u32 %v2294, %v2298
        %v2301 = vshll.u32 %v2112, 16
        %v2303 = vrot.slane %v2301, 1
        %v2304 = vsel %vm1087, %v2299, %v2303
        %2305 = vrot.lane.b32.xlu0 %v2124, 28
        %v2306 = vpop.permute.xlu0 %2305
        %2307 = vrot.lane.b32.xlu0 %v2136, 28
        %v2308 = vpop.permute.xlu0 %2307
        %2309 = vrot.lane.b32.xlu0 %v2148, 28
        %v2310 = vpop.permute.xlu0 %2309
        %2311 = vrot.lane.b32.xlu0 %v2160, 28
        %v2312 = vpop.permute.xlu0 %2311
        %2313 = vrot.lane.b32.xlu0 %v2172, 28
        %v2314 = vpop.permute.xlu0 %2313
        %2315 = vrot.lane.b32.xlu0 %v2184, 28
        %v2316 = vpop.permute.xlu0 %2315
        %2317 = vrot.lane.b32.xlu0 %v2196, 28
        %v2318 = vpop.permute.xlu0 %2317
        %2319 = vrot.lane.b32.xlu0 %v2208, 28
        %v2320 = vpop.permute.xlu0 %2319
        %2321 = vrot.lane.b32.xlu0 %v2220, 28
        %v2322 = vpop.permute.xlu0 %2321
        %2323 = vrot.lane.b32.xlu0 %v2232, 28
        %v2324 = vpop.permute.xlu0 %2323
        %2325 = vrot.lane.b32.xlu0 %v2244, 28
        %v2326 = vpop.permute.xlu0 %2325
        %2327 = vrot.lane.b32.xlu0 %v2256, 28
        %v2328 = vpop.permute.xlu0 %2327
        %2329 = vrot.lane.b32.xlu0 %v2268, 28
        %v2330 = vpop.permute.xlu0 %2329
        %2331 = vrot.lane.b32.xlu0 %v2280, 28
        %v2332 = vpop.permute.xlu0 %2331
        %2333 = vrot.lane.b32.xlu0 %v2292, 28
        %v2334 = vpop.permute.xlu0 %2333
        %2335 = vrot.lane.b32.xlu0 %v2304, 28
        %v2336 = vpop.permute.xlu0 %2335
        %v2353 = vunpack.c.l.b16 %v943
        %v2354 = vunpack.c.l.b16 %v944
        %v2355 = vunpack.c.l.b16 %v945
        %v2356 = vunpack.c.l.b16 %v946
        %v2357 = vunpack.c.l.b16 %v947
        %v2358 = vunpack.c.l.b16 %v948
        %v2359 = vunpack.c.l.b16 %v949
        %v2360 = vunpack.c.l.b16 %v950
        %v2361 = vunpack.c.l.b16 %v951
        %v2362 = vunpack.c.l.b16 %v952
        %v2363 = vunpack.c.l.b16 %v953
        %v2364 = vunpack.c.l.b16 %v954
        %v2365 = vunpack.c.l.b16 %v955
        %v2366 = vunpack.c.l.b16 %v956
        %v2367 = vunpack.c.l.b16 %v957
        %v2368 = vunpack.c.l.b16 %v958
        %v2369 = vpack.c.b16 %v1986, %v2353
        %v2370 = vpack.c.b16 %v1988, %v2354
        %v2371 = vpack.c.b16 %v1990, %v2355
        %v2372 = vpack.c.b16 %v1992, %v2356
        %v2373 = vpack.c.b16 %v1994, %v2357
        %v2374 = vpack.c.b16 %v1996, %v2358
        %v2375 = vpack.c.b16 %v1998, %v2359
        %v2376 = vpack.c.b16 %v2000, %v2360
        %v2377 = vpack.c.b16 %v2002, %v2361
        %v2378 = vpack.c.b16 %v2004, %v2362
        %v2379 = vpack.c.b16 %v2006, %v2363
        %v2380 = vpack.c.b16 %v2008, %v2364
        %v2381 = vpack.c.b16 %v2010, %v2365
        %v2382 = vpack.c.b16 %v2012, %v2366
        %v2383 = vpack.c.b16 %v2014, %v2367
        %v2384 = vpack.c.b16 %v2016, %v2368
        %v2385 = vrot.slane %v2369, 1
        %v2386 = vrot.slane %v2097, 1
        %v2387 = vsel %vm1360, %v2385, %v2386
        %v2388 = vrot.slane %v2370, 1
        %v2389 = vrot.slane %v2098, 1
        %v2390 = vsel %vm1360, %v2388, %v2389
        %v2391 = vrot.slane %v2371, 1
        %v2392 = vrot.slane %v2099, 1
        %v2393 = vsel %vm1360, %v2391, %v2392
        %v2394 = vrot.slane %v2372, 1
        %v2395 = vrot.slane %v2100, 1
        %v2396 = vsel %vm1360, %v2394, %v2395
        %v2397 = vrot.slane %v2373, 1
        %v2398 = vrot.slane %v2101, 1
        %v2399 = vsel %vm1360, %v2397, %v2398
        %v2400 = vrot.slane %v2374, 1
        %v2401 = vrot.slane %v2102, 1
        %v2402 = vsel %vm1360, %v2400, %v2401
        %v2403 = vrot.slane %v2375, 1
        %v2404 = vrot.slane %v2103, 1
        %v2405 = vsel %vm1360, %v2403, %v2404
        %v2406 = vrot.slane %v2376, 1
        %v2407 = vrot.slane %v2104, 1
        %v2408 = vsel %vm1360, %v2406, %v2407
        %v2409 = vrot.slane %v2377, 1
        %v2410 = vrot.slane %v2105, 1
        %v2411 = vsel %vm1360, %v2409, %v2410
        %v2412 = vrot.slane %v2378, 1
        %v2413 = vrot.slane %v2106, 1
        %v2414 = vsel %vm1360, %v2412, %v2413
        %v2415 = vrot.slane %v2379, 1
        %v2416 = vrot.slane %v2107, 1
        %v2417 = vsel %vm1360, %v2415, %v2416
        %v2418 = vrot.slane %v2380, 1
        %v2419 = vrot.slane %v2108, 1
        %v2420 = vsel %vm1360, %v2418, %v2419
        %v2421 = vrot.slane %v2381, 1
        %v2422 = vrot.slane %v2109, 1
        %v2423 = vsel %vm1360, %v2421, %v2422
        %v2424 = vrot.slane %v2382, 1
        %v2425 = vrot.slane %v2110, 1
        %v2426 = vsel %vm1360, %v2424, %v2425
        %v2427 = vrot.slane %v2383, 1
        %v2428 = vrot.slane %v2111, 1
        %v2429 = vsel %vm1360, %v2427, %v2428
        %v2430 = vrot.slane %v2384, 1
        %v2431 = vrot.slane %v2112, 1
        %v2432 = vsel %vm1360, %v2430, %v2431
        %2433 = vrot.lane.b32.xlu0 %v2387, 32
        %v2434 = vpop.permute.xlu0 %2433
        %2435 = vrot.lane.b32.xlu0 %v2390, 32
        %v2436 = vpop.permute.xlu0 %2435
        %2437 = vrot.lane.b32.xlu0 %v2393, 32
        %v2438 = vpop.permute.xlu0 %2437
        %2439 = vrot.lane.b32.xlu0 %v2396, 32
        %v2440 = vpop.permute.xlu0 %2439
        %2441 = vrot.lane.b32.xlu0 %v2399, 32
        %v2442 = vpop.permute.xlu0 %2441
        %2443 = vrot.lane.b32.xlu0 %v2402, 32
        %v2444 = vpop.permute.xlu0 %2443
        %2445 = vrot.lane.b32.xlu0 %v2405, 32
        %v2446 = vpop.permute.xlu0 %2445
        %2447 = vrot.lane.b32.xlu0 %v2408, 32
        %v2448 = vpop.permute.xlu0 %2447
        %2449 = vrot.lane.b32.xlu0 %v2411, 32
        %v2450 = vpop.permute.xlu0 %2449
        %2451 = vrot.lane.b32.xlu0 %v2414, 32
        %v2452 = vpop.permute.xlu0 %2451
        %2453 = vrot.lane.b32.xlu0 %v2417, 32
        %v2454 = vpop.permute.xlu0 %2453
        %2455 = vrot.lane.b32.xlu0 %v2420, 32
        %v2456 = vpop.permute.xlu0 %2455
        %2457 = vrot.lane.b32.xlu0 %v2423, 32
        %v2458 = vpop.permute.xlu0 %2457
        %2459 = vrot.lane.b32.xlu0 %v2426, 32
        %v2460 = vpop.permute.xlu0 %2459
        %2461 = vrot.lane.b32.xlu0 %v2429, 32
        %v2462 = vpop.permute.xlu0 %2461
        %2463 = vrot.lane.b32.xlu0 %v2432, 32
        %v2464 = vpop.permute.xlu0 %2463
        %vm2465 = vcmask 31744
        %v2467 = vsel %vm2465, %v1023, %v1281
        %v2469 = vsel %vm2465, %v1024, %v1283
        %v2471 = vsel %vm2465, %v1025, %v1285
        %v2473 = vsel %vm2465, %v1026, %v1287
        %v2475 = vsel %vm2465, %v1027, %v1289
        %v2477 = vsel %vm2465, %v1028, %v1291
        %v2479 = vsel %vm2465, %v1029, %v1293
        %v2481 = vsel %vm2465, %v1030, %v1295
        %v2483 = vsel %vm2465, %v1031, %v1297
        %v2485 = vsel %vm2465, %v1032, %v1299
        %v2487 = vsel %vm2465, %v1033, %v1301
        %v2489 = vsel %vm2465, %v1034, %v1303
        %v2491 = vsel %vm2465, %v1035, %v1305
        %v2493 = vsel %vm2465, %v1036, %v1307
        %v2495 = vsel %vm2465, %v1037, %v1309
        %v2497 = vsel %vm2465, %v1038, %v1311
        %vm2498 = vcmask 64512
        %v2500 = vsel %vm2498, %v2467, %v1410
        %v2502 = vsel %vm2498, %v2469, %v1412
        %v2504 = vsel %vm2498, %v2471, %v1414
        %v2506 = vsel %vm2498, %v2473, %v1416
        %v2508 = vsel %vm2498, %v2475, %v1418
        %v2510 = vsel %vm2498, %v2477, %v1420
        %v2512 = vsel %vm2498, %v2479, %v1422
        %v2514 = vsel %vm2498, %v2481, %v1424
        %v2516 = vsel %vm2498, %v2483, %v1426
        %v2518 = vsel %vm2498, %v2485, %v1428
        %v2520 = vsel %vm2498, %v2487, %v1430
        %v2522 = vsel %vm2498, %v2489, %v1432
        %v2524 = vsel %vm2498, %v2491, %v1434
        %v2526 = vsel %vm2498, %v2493, %v1436
        %v2528 = vsel %vm2498, %v2495, %v1438
        %v2530 = vsel %vm2498, %v2497, %v1440
        %vm2531 = vcmask 97280
        %v2533 = vsel %vm2531, %v2500, %v1522
        %v2535 = vsel %vm2531, %v2502, %v1524
        %v2537 = vsel %vm2531, %v2504, %v1526
        %v2539 = vsel %vm2531, %v2506, %v1528
        %v2541 = vsel %vm2531, %v2508, %v1530
        %v2543 = vsel %vm2531, %v2510, %v1532
        %v2545 = vsel %vm2531, %v2512, %v1534
        %v2547 = vsel %vm2531, %v2514, %v1536
        %v2549 = vsel %vm2531, %v2516, %v1538
        %v2551 = vsel %vm2531, %v2518, %v1540
        %v2553 = vsel %vm2531, %v2520, %v1542
        %v2555 = vsel %vm2531, %v2522, %v1544
        %v2557 = vsel %vm2531, %v2524, %v1546
        %v2559 = vsel %vm2531, %v2526, %v1548
        %v2561 = vsel %vm2531, %v2528, %v1550
        %v2563 = vsel %vm2531, %v2530, %v1552
        %vm2564 = vcmask 130048
        %v2566 = vsel %vm2564, %v2533, %v1794
        %v2568 = vsel %vm2564, %v2535, %v1796
        %v2570 = vsel %vm2564, %v2537, %v1798
        %v2572 = vsel %vm2564, %v2539, %v1800
        %v2574 = vsel %vm2564, %v2541, %v1802
        %v2576 = vsel %vm2564, %v2543, %v1804
        %v2578 = vsel %vm2564, %v2545, %v1806
        %v2580 = vsel %vm2564, %v2547, %v1808
        %v2582 = vsel %vm2564, %v2549, %v1810
        %v2584 = vsel %vm2564, %v2551, %v1812
        %v2586 = vsel %vm2564, %v2553, %v1814
        %v2588 = vsel %vm2564, %v2555, %v1816
        %v2590 = vsel %vm2564, %v2557, %v1818
        %v2592 = vsel %vm2564, %v2559, %v1820
        %v2594 = vsel %vm2564, %v2561, %v1822
        %v2596 = vsel %vm2564, %v2563, %v1824
        %vm2597 = vcmask 162816
        %v2599 = vsel %vm2597, %v2566, %v1922
        %v2601 = vsel %vm2597, %v2568, %v1924
        %v2603 = vsel %vm2597, %v2570, %v1926
        %v2605 = vsel %vm2597, %v2572, %v1928
        %v2607 = vsel %vm2597, %v2574, %v1930
        %v2609 = vsel %vm2597, %v2576, %v1932
        %v2611 = vsel %vm2597, %v2578, %v1934
        %v2613 = vsel %vm2597, %v2580, %v1936
        %v2615 = vsel %vm2597, %v2582, %v1938
        %v2617 = vsel %vm2597, %v2584, %v1940
        %v2619 = vsel %vm2597, %v2586, %v1942
        %v2621 = vsel %vm2597, %v2588, %v1944
        %v2623 = vsel %vm2597, %v2590, %v1946
        %v2625 = vsel %vm2597, %v2592, %v1948
        %v2627 = vsel %vm2597, %v2594, %v1950
        %v2629 = vsel %vm2597, %v2596, %v1952
        %vm2630 = vcmask 195584
        %v2632 = vsel %vm2630, %v2599, %v2034
        %v2634 = vsel %vm2630, %v2601, %v2036
        %v2636 = vsel %vm2630, %v2603, %v2038
        %v2638 = vsel %vm2630, %v2605, %v2040
        %v2640 = vsel %vm2630, %v2607, %v2042
        %v2642 = vsel %vm2630, %v2609, %v2044
        %v2644 = vsel %vm2630, %v2611, %v2046
        %v2646 = vsel %vm2630, %v2613, %v2048
        %v2648 = vsel %vm2630, %v2615, %v2050
        %v2650 = vsel %vm2630, %v2617, %v2052
        %v2652 = vsel %vm2630, %v2619, %v2054
        %v2654 = vsel %vm2630, %v2621, %v2056
        %v2656 = vsel %vm2630, %v2623, %v2058
        %v2658 = vsel %vm2630, %v2625, %v2060
        %v2660 = vsel %vm2630, %v2627, %v2062
        %v2662 = vsel %vm2630, %v2629, %v2064
        %vm2663 = vcmask 228352
        %v2665 = vsel %vm2663, %v2632, %v2306
        %v2667 = vsel %vm2663, %v2634, %v2308
        %v2669 = vsel %vm2663, %v2636, %v2310
        %v2671 = vsel %vm2663, %v2638, %v2312
        %v2673 = vsel %vm2663, %v2640, %v2314
        %v2675 = vsel %vm2663, %v2642, %v2316
        %v2677 = vsel %vm2663, %v2644, %v2318
        %v2679 = vsel %vm2663, %v2646, %v2320
        %v2681 = vsel %vm2663, %v2648, %v2322
        %v2683 = vsel %vm2663, %v2650, %v2324
        %v2685 = vsel %vm2663, %v2652, %v2326
        %v2687 = vsel %vm2663, %v2654, %v2328
        %v2689 = vsel %vm2663, %v2656, %v2330
        %v2691 = vsel %vm2663, %v2658, %v2332
        %v2693 = vsel %vm2663, %v2660, %v2334
        %v2695 = vsel %vm2663, %v2662, %v2336
        %vm2696 = vcmask 261120
        %v2698 = vsel %vm2696, %v2665, %v2434
        %v2700 = vsel %vm2696, %v2667, %v2436
        %v2702 = vsel %vm2696, %v2669, %v2438
        %v2704 = vsel %vm2696, %v2671, %v2440
        %v2706 = vsel %vm2696, %v2673, %v2442
        %v2708 = vsel %vm2696, %v2675, %v2444
        %v2710 = vsel %vm2696, %v2677, %v2446
        %v2712 = vsel %vm2696, %v2679, %v2448
        %v2714 = vsel %vm2696, %v2681, %v2450
        %v2716 = vsel %vm2696, %v2683, %v2452
        %v2718 = vsel %vm2696, %v2685, %v2454
        %v2720 = vsel %vm2696, %v2687, %v2456
        %v2722 = vsel %vm2696, %v2689, %v2458
        %v2724 = vsel %vm2696, %v2691, %v2460
        %v2726 = vsel %vm2696, %v2693, %v2462
        %v2728 = vsel %vm2696, %v2695, %v2464
        %v2729 = vld [vmem:[%s3] sm:$0xf]
        %v2730 = vld [vmem:[%s3 + $0x4] sm:$0xf]
        %v2731 = vld [vmem:[%s3 + $0x8] sm:$0xf]
        %v2732 = vld [vmem:[%s3 + $0xc] sm:$0xf]
        %v2733 = vld [vmem:[%s3 + $0x10] sm:$0x3]
        %v2739 = vunpack.c.l.b16 %v2729
        %v2740 = vunpack.c.l.b16 %v2730
        %v2741 = vunpack.c.l.b16 %v2731
        %v2742 = vunpack.c.l.b16 %v2732
        %v2743 = vunpack.c.l.b16 %v2733
        %v2744 = vpack.c.b16 %v2740, %v2739
        %v2745 = vpack.c.b16 %v2742, %v2741
        %v2746 = vpack.c.b16 %v2743, %v2743
        %vm2749 = vcmask 293888
        %v2750 = vsel %vm2749, %v2698, 0
        %v2752 = vsel %vm2749, %v2700, 0
        %v2754 = vsel %vm2749, %v2702, 0
        %v2756 = vsel %vm2749, %v2704, 0
        %v2758 = vsel %vm2749, %v2706, 0
        %v2760 = vsel %vm2749, %v2708, 0
        %v2762 = vsel %vm2749, %v2710, 0
        %v2764 = vsel %vm2749, %v2712, 0
        %v2766 = vsel %vm2749, %v2714, 0
        %v2768 = vsel %vm2749, %v2716, 0
        %v2770 = vsel %vm2749, %v2718, 0
        %v2772 = vsel %vm2749, %v2720, 0
        %v2774 = vsel %vm2749, %v2722, 0
        %v2776 = vsel %vm2749, %v2724, 0
        %v2778 = vsel %vm2749, %v2726, 0
        %v2780 = vsel %vm2749, %v2728, 0
        %vm2782 = vcmask 1041408
        %v2784 = vsel %vm2782, %v2746, 0
        %2786 = vmatprep.subr.bf16.mxu0 0
        %2787 = vmatpush1.bf16.msra.mxu0 0
        %2788 = vmatprep.subr.bf16.mxu0 0
        %2789 = vmatpush1.bf16.msra.mxu0 0
        %2790 = vmatprep.subr.bf16.mxu0 0
        %2791 = vmatpush1.bf16.msra.mxu0 0
        %2792 = vmatprep.subr.bf16.mxu0 0
        %2793 = vmatpush1.bf16.msra.mxu0 0
        %2794 = vmatprep.subr.bf16.mxu0 0
        %2795 = vmatpush1.bf16.msra.mxu0 0
        %2796 = vmatprep.subr.bf16.mxu0 0
        %2797 = vmatpush1.bf16.msra.mxu0 %v2784
        %2798 = vmatprep.subr.bf16.mxu0 0
        %2799 = vmatpush1.bf16.msra.mxu0 %v2745
        %2800 = vmatprep.subr.bf16.mxu0 0
        %2801 = vmatpush1.bf16.msra.mxu0 %v2744
        %2802 = vmatprep.subr.bf16.mxu0 0
        %2803 = vmatpush2.bf16.msra.mxu0 0
        %2804 = vmatprep.subr.bf16.mxu0 0
        %2805 = vmatpush2.bf16.msra.mxu0 0
        %2806 = vmatprep.subr.bf16.mxu0 0
        %2807 = vmatpush2.bf16.msra.mxu0 0
        %2808 = vmatprep.subr.bf16.mxu0 0
        %2809 = vmatpush2.bf16.msra.mxu0 0
        %2810 = vmatprep.subr.bf16.mxu0 0
        %2811 = vmatpush2.bf16.msra.mxu0 0
        %2812 = vmatprep.subr.bf16.mxu0 0
        %2813 = vmatpush2.bf16.msra.mxu0 0
        %2814 = vmatprep.subr.bf16.mxu0 0
        %2815 = vmatpush2.bf16.msra.mxu0 0
        %2816 = vmatprep.subr.bf16.mxu0 0
        %2817 = vmatpush2.bf16.msra.mxu0 0
        %2818 = vmatprep.mubr.bf16.mxu0 0
        %2819 = vmatmul.mubr.bf16.gmra.mxu0 %v2750
        %v2820 = vpop.f32.mrf.mxu0
        %v2821 = vadd.f32 0.0, %v2820
        %v2822 = vpop.f32.mrf.mxu0
        %v2823 = vpop.f32.mrf.mxu0
        %v2824 = vadd.f32 0.0, %v2823
        %v2825 = vpop.f32.mrf.mxu0
        %2826 = vmatprep.mubr.bf16.mxu0 0
        %2827 = vmatmul.mubr.bf16.gmra.mxu0 %v2752
        %v2828 = vpop.f32.mrf.mxu0
        %v2829 = vadd.f32 0.0, %v2828
        %v2830 = vpop.f32.mrf.mxu0
        %v2831 = vpop.f32.mrf.mxu0
        %v2832 = vadd.f32 0.0, %v2831
        %v2833 = vpop.f32.mrf.mxu0
        %2834 = vmatprep.mubr.bf16.mxu0 0
        %2835 = vmatmul.mubr.bf16.gmra.mxu0 %v2754
        %v2836 = vpop.f32.mrf.mxu0
        %v2837 = vadd.f32 0.0, %v2836
        %v2838 = vpop.f32.mrf.mxu0
        %v2839 = vpop.f32.mrf.mxu0
        %v2840 = vadd.f32 0.0, %v2839
        %v2841 = vpop.f32.mrf.mxu0
        %2842 = vmatprep.mubr.bf16.mxu0 0
        %2843 = vmatmul.mubr.bf16.gmra.mxu0 %v2756
        %v2844 = vpop.f32.mrf.mxu0
        %v2845 = vadd.f32 0.0, %v2844
        %v2846 = vpop.f32.mrf.mxu0
        %v2847 = vpop.f32.mrf.mxu0
        %v2848 = vadd.f32 0.0, %v2847
        %v2849 = vpop.f32.mrf.mxu0
        %2850 = vmatprep.mubr.bf16.mxu0 0
        %2851 = vmatmul.mubr.bf16.gmra.mxu0 %v2758
        %v2852 = vpop.f32.mrf.mxu0
        %v2853 = vadd.f32 0.0, %v2852
        %v2854 = vpop.f32.mrf.mxu0
        %v2855 = vpop.f32.mrf.mxu0
        %v2856 = vadd.f32 0.0, %v2855
        %v2857 = vpop.f32.mrf.mxu0
        %2858 = vmatprep.mubr.bf16.mxu0 0
        %2859 = vmatmul.mubr.bf16.gmra.mxu0 %v2760
        %v2860 = vpop.f32.mrf.mxu0
        %v2861 = vadd.f32 0.0, %v2860
        %v2862 = vpop.f32.mrf.mxu0
        %v2863 = vpop.f32.mrf.mxu0
        %v2864 = vadd.f32 0.0, %v2863
        %v2865 = vpop.f32.mrf.mxu0
        %2866 = vmatprep.mubr.bf16.mxu0 0
        %2867 = vmatmul.mubr.bf16.gmra.mxu0 %v2762
        %v2868 = vpop.f32.mrf.mxu0
        %v2869 = vadd.f32 0.0, %v2868
        %v2870 = vpop.f32.mrf.mxu0
        %v2871 = vpop.f32.mrf.mxu0
        %v2872 = vadd.f32 0.0, %v2871
        %v2873 = vpop.f32.mrf.mxu0
        %2874 = vmatprep.mubr.bf16.mxu0 0
        %2875 = vmatmul.mubr.bf16.gmra.mxu0 %v2764
        %v2876 = vpop.f32.mrf.mxu0
        %v2877 = vadd.f32 0.0, %v2876
        %v2878 = vpop.f32.mrf.mxu0
        %v2879 = vpop.f32.mrf.mxu0
        %v2880 = vadd.f32 0.0, %v2879
        %v2881 = vpop.f32.mrf.mxu0
        %2882 = vmatprep.mubr.bf16.mxu0 0
        %2883 = vmatmul.mubr.bf16.gmra.mxu0 %v2766
        %v2884 = vpop.f32.mrf.mxu0
        %v2885 = vadd.f32 0.0, %v2884
        %v2886 = vpop.f32.mrf.mxu0
        %v2887 = vpop.f32.mrf.mxu0
        %v2888 = vadd.f32 0.0, %v2887
        %v2889 = vpop.f32.mrf.mxu0
        %2890 = vmatprep.mubr.bf16.mxu0 0
        %2891 = vmatmul.mubr.bf16.gmra.mxu0 %v2768
        %v2892 = vpop.f32.mrf.mxu0
        %v2893 = vadd.f32 0.0, %v2892
        %v2894 = vpop.f32.mrf.mxu0
        %v2895 = vpop.f32.mrf.mxu0
        %v2896 = vadd.f32 0.0, %v2895
        %v2897 = vpop.f32.mrf.mxu0
        %2898 = vmatprep.mubr.bf16.mxu0 0
        %2899 = vmatmul.mubr.bf16.gmra.mxu0 %v2770
        %v2900 = vpop.f32.mrf.mxu0
        %v2901 = vadd.f32 0.0, %v2900
        %v2902 = vpop.f32.mrf.mxu0
        %v2903 = vpop.f32.mrf.mxu0
        %v2904 = vadd.f32 0.0, %v2903
        %v2905 = vpop.f32.mrf.mxu0
        %2906 = vmatprep.mubr.bf16.mxu0 0
        %2907 = vmatmul.mubr.bf16.gmra.mxu0 %v2772
        %v2908 = vpop.f32.mrf.mxu0
        %v2909 = vadd.f32 0.0, %v2908
        %v2910 = vpop.f32.mrf.mxu0
        %v2911 = vpop.f32.mrf.mxu0
        %v2912 = vadd.f32 0.0, %v2911
        %v2913 = vpop.f32.mrf.mxu0
        %2914 = vmatprep.mubr.bf16.mxu0 0
        %2915 = vmatmul.mubr.bf16.gmra.mxu0 %v2774
        %v2916 = vpop.f32.mrf.mxu0
        %v2917 = vadd.f32 0.0, %v2916
        %v2918 = vpop.f32.mrf.mxu0
        %v2919 = vpop.f32.mrf.mxu0
        %v2920 = vadd.f32 0.0, %v2919
        %v2921 = vpop.f32.mrf.mxu0
        %2922 = vmatprep.mubr.bf16.mxu0 0
        %2923 = vmatmul.mubr.bf16.gmra.mxu0 %v2776
        %v2924 = vpop.f32.mrf.mxu0
        %v2925 = vadd.f32 0.0, %v2924
        %v2926 = vpop.f32.mrf.mxu0
        %v2927 = vpop.f32.mrf.mxu0
        %v2928 = vadd.f32 0.0, %v2927
        %v2929 = vpop.f32.mrf.mxu0
        %2930 = vmatprep.mubr.bf16.mxu0 0
        %2931 = vmatmul.mubr.bf16.gmra.mxu0 %v2778
        %v2932 = vpop.f32.mrf.mxu0
        %v2933 = vadd.f32 0.0, %v2932
        %v2934 = vpop.f32.mrf.mxu0
        %v2935 = vpop.f32.mrf.mxu0
        %v2936 = vadd.f32 0.0, %v2935
        %v2937 = vpop.f32.mrf.mxu0
        %2938 = vmatprep.mubr.bf16.mxu0 0
        %2939 = vmatmul.mubr.bf16.gmra.mxu0 %v2780
        %v2940 = vpop.f32.mrf.mxu0
        %v2941 = vadd.f32 0.0, %v2940
        %v2942 = vpop.f32.mrf.mxu0
        %v2943 = vpop.f32.mrf.mxu0
        %v2944 = vadd.f32 0.0, %v2943
        %v2945 = vpop.f32.mrf.mxu0
        %2946 = vdwg.mxu0
        %v2947 = vpack.c.bf16 %v2824, %v2821
        %v2948 = vpack.c.bf16 %v2832, %v2829
        %v2949 = vpack.c.bf16 %v2840, %v2837
        %v2950 = vpack.c.bf16 %v2848, %v2845
        %v2951 = vpack.c.bf16 %v2856, %v2853
        %v2952 = vpack.c.bf16 %v2864, %v2861
        %v2953 = vpack.c.bf16 %v2872, %v2869
        %v2954 = vpack.c.bf16 %v2880, %v2877
        %v2955 = vpack.c.bf16 %v2888, %v2885
        %v2956 = vpack.c.bf16 %v2896, %v2893
        %v2957 = vpack.c.bf16 %v2904, %v2901
        %v2958 = vpack.c.bf16 %v2912, %v2909
        %v2959 = vpack.c.bf16 %v2920, %v2917
        %v2960 = vpack.c.bf16 %v2928, %v2925
        %v2961 = vpack.c.bf16 %v2936, %v2933
        %v2962 = vpack.c.bf16 %v2944, %v2941
        %v2979 = vunpack.c.l.b16 %v2947
        %v2980 = vunpack.c.h.b16 %v2947
        %v2981 = vunpack.c.l.b16 %v2948
        %v2982 = vunpack.c.h.b16 %v2948
        %v2983 = vunpack.c.l.b16 %v2949
        %v2984 = vunpack.c.h.b16 %v2949
        %v2985 = vunpack.c.l.b16 %v2950
        %v2986 = vunpack.c.h.b16 %v2950
        %v2987 = vunpack.c.l.b16 %v2951
        %v2988 = vunpack.c.h.b16 %v2951
        %v2989 = vunpack.c.l.b16 %v2952
        %v2990 = vunpack.c.h.b16 %v2952
        %v2991 = vunpack.c.l.b16 %v2953
        %v2992 = vunpack.c.h.b16 %v2953
        %v2993 = vunpack.c.l.b16 %v2954
        %v2994 = vunpack.c.h.b16 %v2954
        %v2995 = vunpack.c.l.b16 %v2955
        %v2996 = vunpack.c.h.b16 %v2955
        %v2997 = vunpack.c.l.b16 %v2956
        %v2998 = vunpack.c.h.b16 %v2956
        %v2999 = vunpack.c.l.b16 %v2957
        %v3000 = vunpack.c.h.b16 %v2957
        %v3001 = vunpack.c.l.b16 %v2958
        %v3002 = vunpack.c.h.b16 %v2958
        %v3003 = vunpack.c.l.b16 %v2959
        %v3004 = vunpack.c.h.b16 %v2959
        %v3005 = vunpack.c.l.b16 %v2960
        %v3006 = vunpack.c.h.b16 %v2960
        %v3007 = vunpack.c.l.b16 %v2961
        %v3008 = vunpack.c.h.b16 %v2961
        %v3009 = vunpack.c.l.b16 %v2962
        %v3010 = vunpack.c.h.b16 %v2962
        %v3011 = vpack.c.b16 %v2979, %v2979
        %v3012 = vpack.c.b16 %v2980, %v2980
        %v3013 = vpack.c.b16 %v2981, %v2981
        %v3014 = vpack.c.b16 %v2982, %v2982
        %v3015 = vpack.c.b16 %v2983, %v2983
        %v3016 = vpack.c.b16 %v2984, %v2984
        %v3017 = vpack.c.b16 %v2985, %v2985
        %v3018 = vpack.c.b16 %v2986, %v2986
        %v3019 = vpack.c.b16 %v2987, %v2987
        %v3020 = vpack.c.b16 %v2988, %v2988
        %v3021 = vpack.c.b16 %v2989, %v2989
        %v3022 = vpack.c.b16 %v2990, %v2990
        %v3023 = vpack.c.b16 %v2991, %v2991
        %v3024 = vpack.c.b16 %v2992, %v2992
        %v3025 = vpack.c.b16 %v2993, %v2993
        %v3026 = vpack.c.b16 %v2994, %v2994
        %v3027 = vpack.c.b16 %v2995, %v2995
        %v3028 = vpack.c.b16 %v2996, %v2996
        %v3029 = vpack.c.b16 %v2997, %v2997
        %v3030 = vpack.c.b16 %v2998, %v2998
        %v3031 = vpack.c.b16 %v2999, %v2999
        %v3032 = vpack.c.b16 %v3000, %v3000
        %v3033 = vpack.c.b16 %v3001, %v3001
        %v3034 = vpack.c.b16 %v3002, %v3002
        %v3035 = vpack.c.b16 %v3003, %v3003
        %v3036 = vpack.c.b16 %v3004, %v3004
        %v3037 = vpack.c.b16 %v3005, %v3005
        %v3038 = vpack.c.b16 %v3006, %v3006
        %v3039 = vpack.c.b16 %v3007, %v3007
        %v3040 = vpack.c.b16 %v3008, %v3008
        %v3041 = vpack.c.b16 %v3009, %v3009
        %v3042 = vpack.c.b16 %v3010, %v3010
        %vm3075 = vcmask 60416
        %3076 = vst.msk [vmem:[%s235] sm:$0xf] %vm3075, %v3011
        %3077 = vst.msk [vmem:[%s235 + $0x4] sm:$0xf] %vm3075, %v3012
        %3078 = vst.msk [vmem:[%s235 + $0x8] sm:$0xf] %vm3075, %v3013
        %3079 = vst.msk [vmem:[%s235 + $0xc] sm:$0xf] %vm3075, %v3014
        %3080 = vst.msk [vmem:[%s235 + $0x10] sm:$0xf] %vm3075, %v3015
        %3081 = vst.msk [vmem:[%s235 + $0x14] sm:$0xf] %vm3075, %v3016
        %3082 = vst.msk [vmem:[%s235 + $0x18] sm:$0xf] %vm3075, %v3017
        %3083 = vst.msk [vmem:[%s235 + $0x1c] sm:$0xf] %vm3075, %v3018
        %3084 = vst.msk [vmem:[%s235 + $0x20] sm:$0xf] %vm3075, %v3019
        %3085 = vst.msk [vmem:[%s235 + $0x24] sm:$0xf] %vm3075, %v3020
        %3086 = vst.msk [vmem:[%s235 + $0x28] sm:$0xf] %vm3075, %v3021
        %3087 = vst.msk [vmem:[%s235 + $0x2c] sm:$0xf] %vm3075, %v3022
        %3088 = vst.msk [vmem:[%s235 + $0x30] sm:$0xf] %vm3075, %v3023
        %3089 = vst.msk [vmem:[%s235 + $0x34] sm:$0xf] %vm3075, %v3024
        %3090 = vst.msk [vmem:[%s235 + $0x38] sm:$0xf] %vm3075, %v3025
        %3091 = vst.msk [vmem:[%s235 + $0x3c] sm:$0xf] %vm3075, %v3026
        %3092 = vst.msk [vmem:[%s235 + $0x40] sm:$0xf] %vm3075, %v3027
        %3093 = vst.msk [vmem:[%s235 + $0x44] sm:$0xf] %vm3075, %v3028
        %3094 = vst.msk [vmem:[%s235 + $0x48] sm:$0xf] %vm3075, %v3029
        %3095 = vst.msk [vmem:[%s235 + $0x4c] sm:$0xf] %vm3075, %v3030
        %3096 = vst.msk [vmem:[%s235 + $0x50] sm:$0xf] %vm3075, %v3031
        %3097 = vst.msk [vmem:[%s235 + $0x54] sm:$0xf] %vm3075, %v3032
        %3098 = vst.msk [vmem:[%s235 + $0x58] sm:$0xf] %vm3075, %v3033
        %3099 = vst.msk [vmem:[%s235 + $0x5c] sm:$0xf] %vm3075, %v3034
        %3100 = vst.msk [vmem:[%s235 + $0x60] sm:$0xf] %vm3075, %v3035
        %3101 = vst.msk [vmem:[%s235 + $0x64] sm:$0xf] %vm3075, %v3036
        %3102 = vst.msk [vmem:[%s235 + $0x68] sm:$0xf] %vm3075, %v3037
        %3103 = vst.msk [vmem:[%s235 + $0x6c] sm:$0xf] %vm3075, %v3038
        %3104 = vst.msk [vmem:[%s235 + $0x70] sm:$0xf] %vm3075, %v3039
        %3105 = vst.msk [vmem:[%s235 + $0x74] sm:$0xf] %vm3075, %v3040
        %3106 = vst.msk [vmem:[%s235 + $0x78] sm:$0xf] %vm3075, %v3041
        %3107 = vst.msk [vmem:[%s235 + $0x7c] sm:$0xf] %vm3075, %v3042
        %v3108 = vsel %vm2498, %v2821, 0.0
        %v3109 = vsel %vm2498, %v2824, 0.0
        %v3110 = vadd.f32 %v3108, %v3109
        %v3111 = vsel %vm2498, %v2829, 0.0
        %v3112 = vadd.f32 %v3110, %v3111
        %v3113 = vsel %vm2498, %v2832, 0.0
        %v3114 = vadd.f32 %v3112, %v3113
        %v3115 = vsel %vm2498, %v2837, 0.0
        %v3116 = vadd.f32 %v3114, %v3115
        %v3117 = vsel %vm2498, %v2840, 0.0
        %v3118 = vadd.f32 %v3116, %v3117
        %v3119 = vsel %vm2498, %v2845, 0.0
        %v3120 = vadd.f32 %v3118, %v3119
        %v3121 = vsel %vm2498, %v2848, 0.0
        %v3122 = vadd.f32 %v3120, %v3121
        %v3123 = vsel %vm2498, %v2853, 0.0
        %v3124 = vadd.f32 %v3122, %v3123
        %v3125 = vsel %vm2498, %v2856, 0.0
        %v3126 = vadd.f32 %v3124, %v3125
        %v3127 = vsel %vm2498, %v2861, 0.0
        %v3128 = vadd.f32 %v3126, %v3127
        %v3129 = vsel %vm2498, %v2864, 0.0
        %v3130 = vadd.f32 %v3128, %v3129
        %v3131 = vsel %vm2498, %v2869, 0.0
        %v3132 = vadd.f32 %v3130, %v3131
        %v3133 = vsel %vm2498, %v2872, 0.0
        %v3134 = vadd.f32 %v3132, %v3133
        %v3135 = vsel %vm2498, %v2877, 0.0
        %v3136 = vadd.f32 %v3134, %v3135
        %v3137 = vsel %vm2498, %v2880, 0.0
        %v3138 = vadd.f32 %v3136, %v3137
        %v3139 = vsel %vm2498, %v2885, 0.0
        %v3140 = vadd.f32 %v3138, %v3139
        %v3141 = vsel %vm2498, %v2888, 0.0
        %v3142 = vadd.f32 %v3140, %v3141
        %v3143 = vsel %vm2498, %v2893, 0.0
        %v3144 = vadd.f32 %v3142, %v3143
        %v3145 = vsel %vm2498, %v2896, 0.0
        %v3146 = vadd.f32 %v3144, %v3145
        %v3147 = vsel %vm2498, %v2901, 0.0
        %v3148 = vadd.f32 %v3146, %v3147
        %v3149 = vsel %vm2498, %v2904, 0.0
        %v3150 = vadd.f32 %v3148, %v3149
        %v3151 = vsel %vm2498, %v2909, 0.0
        %v3152 = vadd.f32 %v3150, %v3151
        %v3153 = vsel %vm2498, %v2912, 0.0
        %v3154 = vadd.f32 %v3152, %v3153
        %v3155 = vsel %vm2498, %v2917, 0.0
        %v3156 = vadd.f32 %v3154, %v3155
        %v3157 = vsel %vm2498, %v2920, 0.0
        %v3158 = vadd.f32 %v3156, %v3157
        %v3159 = vsel %vm2498, %v2925, 0.0
        %v3160 = vadd.f32 %v3158, %v3159
        %v3161 = vsel %vm2498, %v2928, 0.0
        %v3162 = vadd.f32 %v3160, %v3161
        %v3163 = vsel %vm2498, %v2933, 0.0
        %v3164 = vadd.f32 %v3162, %v3163
        %v3165 = vsel %vm2498, %v2936, 0.0
        %v3166 = vadd.f32 %v3164, %v3165
        %v3167 = vsel %vm2498, %v2941, 0.0
        %v3168 = vadd.f32 %v3166, %v3167
        %v3169 = vsel %vm2498, %v2944, 0.0
        %v3170 = vadd.f32 %v3168, %v3169
        %v3171 = vrot.slane %v3170, 4
        %v3172 = vadd.f32 %v3170, %v3171
        %v3173 = vrot.slane %v3172, 2
        %v3174 = vadd.f32 %v3172, %v3173
        %v3175 = vrot.slane %v3174, 1
        %v3176 = vadd.f32 %v3174, %v3175
        %v3177 = vmul.f32 %v2821, %v2821
        %v3178 = vmul.f32 %v2824, %v2824
        %v3179 = vmul.f32 %v2829, %v2829
        %v3180 = vmul.f32 %v2832, %v2832
        %v3181 = vmul.f32 %v2837, %v2837
        %v3182 = vmul.f32 %v2840, %v2840
        %v3183 = vmul.f32 %v2845, %v2845
        %v3184 = vmul.f32 %v2848, %v2848
        %v3185 = vmul.f32 %v2853, %v2853
        %v3186 = vmul.f32 %v2856, %v2856
        %v3187 = vmul.f32 %v2861, %v2861
        %v3188 = vmul.f32 %v2864, %v2864
        %v3189 = vmul.f32 %v2869, %v2869
        %v3190 = vmul.f32 %v2872, %v2872
        %v3191 = vmul.f32 %v2877, %v2877
        %v3192 = vmul.f32 %v2880, %v2880
        %v3193 = vmul.f32 %v2885, %v2885
        %v3194 = vmul.f32 %v2888, %v2888
        %v3195 = vmul.f32 %v2893, %v2893
        %v3196 = vmul.f32 %v2896, %v2896
        %v3197 = vmul.f32 %v2901, %v2901
        %v3198 = vmul.f32 %v2904, %v2904
        %v3199 = vmul.f32 %v2909, %v2909
        %v3200 = vmul.f32 %v2912, %v2912
        %v3201 = vmul.f32 %v2917, %v2917
        %v3202 = vmul.f32 %v2920, %v2920
        %v3203 = vmul.f32 %v2925, %v2925
        %v3204 = vmul.f32 %v2928, %v2928
        %v3205 = vmul.f32 %v2933, %v2933
        %v3206 = vmul.f32 %v2936, %v2936
        %v3207 = vmul.f32 %v2941, %v2941
        %v3208 = vmul.f32 %v2944, %v2944
        %v3209 = vsel %vm2498, %v3177, 0.0
        %v3210 = vsel %vm2498, %v3178, 0.0
        %v3211 = vadd.f32 %v3209, %v3210
        %v3212 = vsel %vm2498, %v3179, 0.0
        %v3213 = vadd.f32 %v3211, %v3212
        %v3214 = vsel %vm2498, %v3180, 0.0
        %v3215 = vadd.f32 %v3213, %v3214
        %v3216 = vsel %vm2498, %v3181, 0.0
        %v3217 = vadd.f32 %v3215, %v3216
        %v3218 = vsel %vm2498, %v3182, 0.0
        %v3219 = vadd.f32 %v3217, %v3218
        %v3220 = vsel %vm2498, %v3183, 0.0
        %v3221 = vadd.f32 %v3219, %v3220
        %v3222 = vsel %vm2498, %v3184, 0.0
        %v3223 = vadd.f32 %v3221, %v3222
        %v3224 = vsel %vm2498, %v3185, 0.0
        %v3225 = vadd.f32 %v3223, %v3224
        %v3226 = vsel %vm2498, %v3186, 0.0
        %v3227 = vadd.f32 %v3225, %v3226
        %v3228 = vsel %vm2498, %v3187, 0.0
        %v3229 = vadd.f32 %v3227, %v3228
        %v3230 = vsel %vm2498, %v3188, 0.0
        %v3231 = vadd.f32 %v3229, %v3230
        %v3232 = vsel %vm2498, %v3189, 0.0
        %v3233 = vadd.f32 %v3231, %v3232
        %v3234 = vsel %vm2498, %v3190, 0.0
        %v3235 = vadd.f32 %v3233, %v3234
        %v3236 = vsel %vm2498, %v3191, 0.0
        %v3237 = vadd.f32 %v3235, %v3236
        %v3238 = vsel %vm2498, %v3192, 0.0
        %v3239 = vadd.f32 %v3237, %v3238
        %v3240 = vsel %vm2498, %v3193, 0.0
        %v3241 = vadd.f32 %v3239, %v3240
        %v3242 = vsel %vm2498, %v3194, 0.0
        %v3243 = vadd.f32 %v3241, %v3242
        %v3244 = vsel %vm2498, %v3195, 0.0
        %v3245 = vadd.f32 %v3243, %v3244
        %v3246 = vsel %vm2498, %v3196, 0.0
        %v3247 = vadd.f32 %v3245, %v3246
        %v3248 = vsel %vm2498, %v3197, 0.0
        %v3249 = vadd.f32 %v3247, %v3248
        %v3250 = vsel %vm2498, %v3198, 0.0
        %v3251 = vadd.f32 %v3249, %v3250
        %v3252 = vsel %vm2498, %v3199, 0.0
        %v3253 = vadd.f32 %v3251, %v3252
        %v3254 = vsel %vm2498, %v3200, 0.0
        %v3255 = vadd.f32 %v3253, %v3254
        %v3256 = vsel %vm2498, %v3201, 0.0
        %v3257 = vadd.f32 %v3255, %v3256
        %v3258 = vsel %vm2498, %v3202, 0.0
        %v3259 = vadd.f32 %v3257, %v3258
        %v3260 = vsel %vm2498, %v3203, 0.0
        %v3261 = vadd.f32 %v3259, %v3260
        %v3262 = vsel %vm2498, %v3204, 0.0
        %v3263 = vadd.f32 %v3261, %v3262
        %v3264 = vsel %vm2498, %v3205, 0.0
        %v3265 = vadd.f32 %v3263, %v3264
        %v3266 = vsel %vm2498, %v3206, 0.0
        %v3267 = vadd.f32 %v3265, %v3266
        %v3268 = vsel %vm2498, %v3207, 0.0
        %v3269 = vadd.f32 %v3267, %v3268
        %v3270 = vsel %vm2498, %v3208, 0.0
        %v3271 = vadd.f32 %v3269, %v3270
        %v3272 = vrot.slane %v3271, 4
        %v3273 = vadd.f32 %v3271, %v3272
        %v3274 = vrot.slane %v3273, 2
        %v3275 = vadd.f32 %v3273, %v3274
        %v3276 = vrot.slane %v3275, 1
        %v3277 = vadd.f32 %v3275, %v3276
        %vm3278 = vcmask 1040384
        %v3279 = vsel %vm3278, %v3176, %v3277
        %vm3280 = vcmask 58368
        %3281 = vst.msk [vmem:[%s225] sm:$0x3] %vm3280, %v3279
        %p3282 = scmp.lt.s32.totalorder %s20, 1
        %s3283 = scalar_select %p3282, %s20, 1
        %s3284 = smul.addr %s3283, 32
        %s3285 = smul.addr %s3284, 4
        %s3286 = scalar_lea.vmem %s4, %s3285
        %s3287 = sand.u32 %s143, 1
        %s3288 = scalar_lea.sflag [#allocation4], %s3287
        %s3289 = sand.u32 %s143, 1
        %s3290 = smul.addr %s3289, 2
        %s3291 = scalar_lea.vmem [#allocation3], %s3290
        // Predicated region
        $region37: #{tpu_custom_call.1} parent=35 // pred_check
          %p3292 = pneg %p127
        $region38: #{tpu_custom_call.1} parent=35 // pred_check_branch
          %3294 = sbr.rel (%p3292) target = $region40
        $region39: #{tpu_custom_call.1} parent=35 // pred_region
          _
        $region40: #{tpu_custom_call.1} parent=35 // pred_fallthru
          _
        // Predicated region
        $region41: #{tpu_custom_call.1} parent=35 // pred_check
          %p3295 = pneg %p153
        $region42: #{tpu_custom_call.1} parent=35 // pred_check_branch
          %3297 = sbr.rel (%p3295) target = $region44
        $region43: #{tpu_custom_call.1} parent=35 // pred_region
          %s3299 = ssub.s32 32, 32
          %3300 = vsyncadd %s3288, %s3299
          %s3301 = smul.addr %s20, 32
          %s3302 = scalar_lea.hbm %s5, %s3301
          %s3304 = sshll.u32 %s3291, 4
          %s3305 = int_to_ptr.vmem [resolvable:$true] %s3304
          %3307 = dma.vmem_to_hbm [thread:$0]  %s3305, 32, %s3302, %s3288
        $region44: #{tpu_custom_call.1} parent=35 // pred_fallthru
          _
      $region36: #{tpu_custom_call.1} parent=5 // pred_fallthru
        _
      %p3308 = scmp.le.s32.totalorder 2, %s15
      // Predicated region
      $region45: #{tpu_custom_call.1} parent=5 // pred_check
        %p3309 = pneg %p3308
      $region46: #{tpu_custom_call.1} parent=5 // pred_check_branch
        %3311 = sbr.rel (%p3309) target = $region48
      $region47: #{tpu_custom_call.1} parent=5 // pred_region
        %s3312 = ssub.s32 %s15, 2
        // Predicated region
        $region49: #{tpu_custom_call.1} parent=47 // pred_check
          %p3313 = pneg %p133
        $region50: #{tpu_custom_call.1} parent=47 // pred_check_branch
          %3315 = sbr.rel (%p3313) target = $region52
        $region51: #{tpu_custom_call.1} parent=47 // pred_region
          %p3316 = scmp.lt.s32.totalorder %s21, 1
          %s3317 = scalar_select %p3316, %s21, 1
          %s3318 = smul.addr %s3317, 32
          %s3319 = smul.addr %s3318, 4
          %s3320 = scalar_lea.vmem %s4, %s3319
        $region52: #{tpu_custom_call.1} parent=47 // pred_fallthru
          _
        // Predicated region
        $region53: #{tpu_custom_call.1} parent=47 // pred_check
          %p3321 = pneg %p159
        $region54: #{tpu_custom_call.1} parent=47 // pred_check_branch
          %3323 = sbr.rel (%p3321) target = $region56
        $region55: #{tpu_custom_call.1} parent=47 // pred_region
          %s3324 = sand.u32 %s144, 1
          %s3325 = scalar_lea.sflag [#allocation4], %s3324
          %s3326 = sand.u32 %s144, 1
          %s3327 = smul.addr %s3326, 2
          %s3328 = scalar_lea.vmem [#allocation3], %s3327
          %3329 = dma.done %s3325, 32
        $region56: #{tpu_custom_call.1} parent=47 // pred_fallthru
          _
      $region48: #{tpu_custom_call.1} parent=5 // pred_fallthru
        _
    $region6: #{tpu_custom_call.1} parent=1 // loop_footer
      %s19 = sadd.s32 1, %s15
    $region7: #{tpu_custom_call.1} parent=1 // loop_footer_branch
      %14 = sbr.rel target = $region3
    $region8: #{tpu_custom_call.1} parent=1 // loop_exit
      _
    %3330 = vsyncpa [#allocation4], 1
    %s3331 = scalar_lea.sflag [#allocation4], 1
    %3332 = vsyncpa %s3331, 1

</llo_original>
